<compile_context>
chip_gen: v5e
topology: v5e:2x2
jax: 0.10.0
libtpu: 0.0.40
codegen_flags: <defaults>
</compile_context>

<pallas_src>
import math

import jax
import jax.numpy as jnp
import numpy as np
from jax.experimental import pallas as pl
from jax.experimental.pallas import tpu as pltpu

# ----------------------------- configuration -------------------------------
N_BATCH = 2          # number of prompts
SEQ     = 8          # context length
DIM     = 32         # transformer width
HEADS   = 4
HEAD_DIM = DIM // HEADS
LAYERS  = 2          # transformer depth
MLP_DIM = 4 * DIM
EMBED   = 32         # text_projection output dim
N_CTX   = 2          # compound-prompt context length (MaPLe)
N_COMPOUND = 1       # number of deep compound prompts
LN_EPS  = 1e-5
TOK     = N_BATCH * SEQ       # flattened batch*seq token count
NEG     = -1e30               # finite "masked" value (avoids -inf NaN hazards)


# --------------------------- fused Pallas kernel -----------------------------
def _fused_text_encoder_kernel(
        x0_ref, ctx_ref, rowmask_ref, mask_ref, sel_ref,
        lnf_g_ref, lnf_b_ref, proj_ref,
        ln1_g_ref, ln1_b_ref, wqkv_ref, bqkv_ref, wo_ref, bo_ref,
        ln2_g_ref, ln2_b_ref, w1_ref, b1_ref, w2_ref, b2_ref,
        out_ref):
    """Single grid step; all LAYERS transformer blocks unrolled in-kernel."""
    f32 = jnp.float32
    bf16 = jnp.bfloat16

    def layer_norm(y, g, b):
        mu = jnp.mean(y, axis=-1, keepdims=True)
        var = jnp.mean((y - mu) ** 2, axis=-1, keepdims=True)
        return (y - mu) * jax.lax.rsqrt(var + LN_EPS) * g + b

    x = x0_ref[...]                         # (TOK, DIM) f32, stays f32 on the residual path
    mask = mask_ref[...]                    # (TOK, TOK) f32 block-diagonal causal mask (hoisted)
    row_sel = rowmask_ref[...] > 0.5        # (TOK, 1) compound-prompt row selector

    for i in range(LAYERS):                 # static unroll (tiny depth; no grid-step overhead)
        # ---- MaPLe deep-prompt replacement: full-tile blend, no row stores ----
        if 1 <= i <= N_COMPOUND:
            x = jnp.where(row_sel, ctx_ref[i - 1], x)

        # ---- attention branch: x + MHA(LN1(x)) ----
        xn = layer_norm(x, ln1_g_ref[i], ln1_b_ref[i])
        # one (TOK,DIM)@(DIM,3*DIM) MXU pass; q scale pre-folded into Wq/bq host-side
        qkv = jnp.dot(xn.astype(bf16), wqkv_ref[i],
                      preferred_element_type=f32) + bqkv_ref[i]          # (TOK, 3*DIM) f32

        o_heads = []
        for h in range(HEADS):              # static; each per-head matmul is one MXU pass anyway
            q_h = qkv[:, h * HEAD_DIM:(h + 1) * HEAD_DIM].astype(bf16)           # (TOK, hd)
            k_h = qkv[:, DIM + h * HEAD_DIM:DIM + (h + 1) * HEAD_DIM].astype(bf16)
            v_h = qkv[:, 2 * DIM + h * HEAD_DIM:2 * DIM + (h + 1) * HEAD_DIM].astype(bf16)
            # q @ k^T via transposed contracting dims (no materialized transpose)
            s = jax.lax.dot_general(q_h, k_h, (((1,), (1,)), ((), ())),
                                    preferred_element_type=f32) + mask           # (TOK, TOK) f32
            m = jnp.max(s, axis=-1, keepdims=True)
            e = jnp.exp(s - m)
            inv = pl.reciprocal(jnp.sum(e, axis=-1, keepdims=True), approx=True)  # EUP slot
            p = e * inv
            o_heads.append(jnp.dot(p.astype(bf16), v_h,
                                   preferred_element_type=f32))                   # (TOK, hd) f32
        # concat heads back to (TOK, DIM); head reduction fused into ONE Wo matmul
        o = jnp.concatenate(o_heads, axis=-1)                                     # (TOK, DIM) f32
        attn = jnp.dot(o.astype(bf16), wo_ref[i],
                       preferred_element_type=f32) + bo_ref[i]
        x = x + attn

        # ---- MLP branch: x + MLP(LN2(x)), QuickGELU (f32 elementwise) ----
        xn2 = layer_norm(x, ln2_g_ref[i], ln2_b_ref[i])
        h1 = jnp.dot(xn2.astype(bf16), w1_ref[i],
                     preferred_element_type=f32) + b1_ref[i]
        h1 = h1 * jax.nn.sigmoid(1.702 * h1)
        x = x + jnp.dot(h1.astype(bf16), w2_ref[i],
                        preferred_element_type=f32) + b2_ref[i]

    # ---- EOT gather (one-hot matmul) + ln_final + text_projection ----
    eot_rows = jnp.dot(sel_ref[...], x, preferred_element_type=f32)    # (N_BATCH, DIM) f32
    rn = layer_norm(eot_rows, lnf_g_ref[...], lnf_b_ref[...])
    out_ref[...] = jnp.dot(rn.astype(bf16), proj_ref[...],
                           preferred_element_type=f32)


# ------------------------------ wrappers ------------------------------------
def _const_spec(shape):
    zeros = (0,) * len(shape)
    return pl.BlockSpec(tuple(shape), lambda l: zeros)


def _stack_layer_params(blocks):
    """Pre-scale q, cast matmul weights to bf16, stack along a layer axis."""
    scale = 1.0 / math.sqrt(HEAD_DIM)

    def prep(p):
        wqkv = p['wqkv'].at[:, :DIM].multiply(scale)      # fold 1/sqrt(hd) into Wq
        bqkv = p['bqkv'].at[:, :DIM].multiply(scale)      # ... and into bq
        return dict(
            ln1_g=p['ln1_g'], ln1_b=p['ln1_b'],
            wqkv=wqkv.astype(jnp.bfloat16), bqkv=bqkv,
            wo=p['wo'].astype(jnp.bfloat16), bo=p['bo'],
            ln2_g=p['ln2_g'], ln2_b=p['ln2_b'],
            w1=p['w1'].astype(jnp.bfloat16), b1=p['b1'],
            w2=p['w2'].astype(jnp.bfloat16), b2=p['b2'])

    pre = [prep(p) for p in blocks]
    return {k: jnp.stack([r[k] for r in pre], axis=0) for k in pre[0]}


def text_encoder_forward(prompts, tokenized_prompts, compound_prompts_deeper_text, params):
    # x = prompts + positional_embedding, flattened to (TOK, DIM)
    x0 = (prompts + params['pos_emb'][None]).reshape(TOK, DIM).astype(jnp.float32)

    # compound deep prompts tiled into their target rows of the flattened tile
    comp = jnp.stack(compound_prompts_deeper_text, axis=0)          # (N_COMPOUND, N_CTX, DIM)
    ctx_full = jnp.zeros((N_COMPOUND, N_BATCH, SEQ, DIM), jnp.float32)
    ctx_full = ctx_full.at[:, :, 1:1 + N_CTX, :].set(comp[:, None])
    ctx_full = ctx_full.reshape(N_COMPOUND, TOK, DIM)

    # static masks, built host-side (hoisted out of the per-layer body)
    pos = np.arange(TOK) % SEQ
    row_mask = jnp.asarray(((pos >= 1) & (pos < 1 + N_CTX))
                           .astype(np.float32).reshape(TOK, 1))
    r = np.arange(TOK)
    allowed = (r[:, None] // SEQ == r[None, :] // SEQ) & (r[None, :] <= r[:, None])
    attn_mask = jnp.asarray(np.where(allowed, 0.0, NEG).astype(np.float32))

    # EOT gather as a one-hot selection matrix over flattened tokens
    eot_idx = jnp.argmax(tokenized_prompts, axis=-1).astype(jnp.int32)
    flat_idx = jnp.arange(N_BATCH, dtype=jnp.int32) * SEQ + eot_idx
    sel = jax.nn.one_hot(flat_idx, TOK, dtype=jnp.float32)          # (N_BATCH, TOK)

    stk = _stack_layer_params(params['blocks'])

    args = (x0, ctx_full, row_mask, attn_mask, sel,
            params['lnf_g'], params['lnf_b'], params['proj'].astype(jnp.bfloat16),
            stk['ln1_g'], stk['ln1_b'], stk['wqkv'], stk['bqkv'], stk['wo'], stk['bo'],
            stk['ln2_g'], stk['ln2_b'], stk['w1'], stk['b1'], stk['w2'], stk['b2'])

    in_specs = [_const_spec(a.shape) for a in args]

    return pl.pallas_call(
        _fused_text_encoder_kernel,
        out_shape=jax.ShapeDtypeStruct((N_BATCH, EMBED), jnp.float32),
        grid_spec=pltpu.PrefetchScalarGridSpec(
            num_scalar_prefetch=0,
            grid=(1,),                       # all layers unrolled in-kernel at this toy size
            in_specs=in_specs,
            out_specs=pl.BlockSpec((N_BATCH, EMBED), lambda l: (0, 0)),
        ),
        compiler_params=pltpu.CompilerParams(dimension_semantics=("arbitrary",)),
    )(*args)


# --------------------------- pure-JAX reference ------------------------------
def _ln_ref(x, g, b):
    mu = x.mean(-1, keepdims=True)
    var = ((x - mu) ** 2).mean(-1, keepdims=True)
    return (x - mu) * jax.lax.rsqrt(var + LN_EPS) * g + b


def reference_forward(prompts, tokenized, compound, params):
    x = prompts + params['pos_emb'][None]
    mask = jnp.where(jnp.triu(jnp.ones((SEQ, SEQ), bool), k=1), NEG, 0.0)
    counter = 0
    for i in range(LAYERS):
        p = params['blocks'][i]
        if i > 0 and counter < len(compound):
            ctx = jnp.broadcast_to(compound[counter][None], (N_BATCH, N_CTX, DIM))
            x = jnp.concatenate([x[:, :1], ctx, x[:, 1 + N_CTX:]], axis=1)
            counter += 1
        xn = _ln_ref(x, p['ln1_g'][0], p['ln1_b'][0])
        qkv = xn @ p['wqkv'] + p['bqkv'][0]
        q, k, v = jnp.split(qkv, 3, axis=-1)
        q = q.reshape(N_BATCH, SEQ, HEADS, HEAD_DIM).transpose(0, 2, 1, 3)
        k = k.reshape(N_BATCH, SEQ, HEADS, HEAD_DIM).transpose(0, 2, 1, 3)
        v = v.reshape(N_BATCH, SEQ, HEADS, HEAD_DIM).transpose(0, 2, 1, 3)
        s = jnp.einsum('bhqd,bhkd->bhqk', q, k) / (HEAD_DIM ** 0.5) + mask
        a = jax.nn.softmax(s, axis=-1)
        o = jnp.einsum('bhqk,bhkd->bhqd', a, v).transpose(0, 2, 1, 3).reshape(N_BATCH, SEQ, DIM)
        x = x + o @ p['wo'] + p['bo'][0]
        xn2 = _ln_ref(x, p['ln2_g'][0], p['ln2_b'][0])
        h1 = xn2 @ p['w1'] + p['b1'][0]
        h1 = h1 * jax.nn.sigmoid(1.702 * h1)
        x = x + h1 @ p['w2'] + p['b2'][0]
    x = _ln_ref(x, params['lnf_g'][0], params['lnf_b'][0])
    eot = jnp.argmax(tokenized, axis=-1)
    return x[jnp.arange(N_BATCH), eot] @ params['proj']


# ------------------------------ parameters ----------------------------------
def init_params(key):
    keys = jax.random.split(key, LAYERS + 2)

    def nrm(k, shape, scale=0.02):
        return scale * jax.random.normal(k, shape, jnp.float32)

    blocks = []
    for i in range(LAYERS):
        bk = jax.random.split(keys[i], 6)
        blocks.append(dict(
            ln1_g=jnp.ones((1, DIM), jnp.float32), ln1_b=jnp.zeros((1, DIM), jnp.float32),
            wqkv=nrm(bk[0], (DIM, 3 * DIM)), bqkv=nrm(bk[1], (1, 3 * DIM)),
            wo=nrm(bk[2], (DIM, DIM)), bo=nrm(bk[3], (1, DIM)),
            ln2_g=jnp.ones((1, DIM), jnp.float32), ln2_b=jnp.zeros((1, DIM), jnp.float32),
            w1=nrm(bk[4], (DIM, MLP_DIM)), b1=jnp.zeros((1, MLP_DIM), jnp.float32),
            w2=nrm(bk[5], (MLP_DIM, DIM)), b2=jnp.zeros((1, DIM), jnp.float32),
        ))
    return dict(
        blocks=blocks,
        pos_emb=nrm(keys[LAYERS], (SEQ, DIM)),
        lnf_g=jnp.ones((1, DIM), jnp.float32),
        lnf_b=jnp.zeros((1, DIM), jnp.float32),
        proj=nrm(keys[LAYERS + 1], (DIM, EMBED)),
    )


# -------------------------------- main ---------------------------------------
if __name__ == "__main__":
    key = jax.random.PRNGKey(0)
    kp, kc, kt, kw = jax.random.split(key, 4)
    params = init_params(kw)

    prompts = 0.02 * jax.random.normal(kp, (N_BATCH, SEQ, DIM), jnp.float32)
    compound_prompts_deeper_text = [0.02 * jax.random.normal(kc, (N_CTX, DIM), jnp.float32)]
    # tokenized prompts: argmax along last dim marks the EOT position (5 and 6)
    tokenized_prompts = jax.random.randint(kt, (N_BATCH, SEQ), 1, 100, dtype=jnp.int32)
    tokenized_prompts = tokenized_prompts.at[0, 5].set(1000).at[1, 6].set(1000)

    out = text_encoder_forward(prompts, tokenized_prompts,
                               compound_prompts_deeper_text, params)
    out = jax.block_until_ready(out)

    ref = reference_forward(prompts, tokenized_prompts,
                            compound_prompts_deeper_text, params)
    assert out.shape == (N_BATCH, EMBED)
    # bf16 MXU operands (f32 accumulate / f32 elementwise) => slightly relaxed tolerance
    np.testing.assert_allclose(np.asarray(out), np.asarray(ref), rtol=2e-2, atol=2e-3)
    print("KERNEL_OK")
</pallas_src>

<mosaic_0001>
module attributes {stable_mosaic.version = 11 : i64} {
  func.func @_fused_text_encoder_kernel(%arg0: i32, %arg1: memref<16x32xf32, #tpu.memory_space<vmem>>, %arg2: memref<1x16x32xf32, #tpu.memory_space<vmem>>, %arg3: memref<16x1xf32, #tpu.memory_space<vmem>>, %arg4: memref<16x16xf32, #tpu.memory_space<vmem>>, %arg5: memref<2x16xf32, #tpu.memory_space<vmem>>, %arg6: memref<1x32xf32, #tpu.memory_space<vmem>>, %arg7: memref<1x32xf32, #tpu.memory_space<vmem>>, %arg8: memref<32x32xbf16, #tpu.memory_space<vmem>>, %arg9: memref<2x1x32xf32, #tpu.memory_space<vmem>>, %arg10: memref<2x1x32xf32, #tpu.memory_space<vmem>>, %arg11: memref<2x32x96xbf16, #tpu.memory_space<vmem>>, %arg12: memref<2x1x96xf32, #tpu.memory_space<vmem>>, %arg13: memref<2x32x32xbf16, #tpu.memory_space<vmem>>, %arg14: memref<2x1x32xf32, #tpu.memory_space<vmem>>, %arg15: memref<2x1x32xf32, #tpu.memory_space<vmem>>, %arg16: memref<2x1x32xf32, #tpu.memory_space<vmem>>, %arg17: memref<2x32x128xbf16, #tpu.memory_space<vmem>>, %arg18: memref<2x1x128xf32, #tpu.memory_space<vmem>>, %arg19: memref<2x128x32xbf16, #tpu.memory_space<vmem>>, %arg20: memref<2x1x32xf32, #tpu.memory_space<vmem>>, %arg21: memref<2x32xf32, #tpu.memory_space<vmem>>) attributes {dimension_semantics = [#tpu.dimension_semantics<arbitrary>], iteration_bounds = array<i64: 1>, scalar_prefetch = 0 : i64, scratch_operands = 0 : i64, tpu.core_type = #tpu.core_type<tc>, window_params = [{pipeline_mode = #tpu.pipeline_mode<synchronous>, transform_indices = @transform_0, window_bounds = array<i64: 16, 32>}, {pipeline_mode = #tpu.pipeline_mode<synchronous>, transform_indices = @transform_1, window_bounds = array<i64: 1, 16, 32>}, {pipeline_mode = #tpu.pipeline_mode<synchronous>, transform_indices = @transform_2, window_bounds = array<i64: 16, 1>}, {pipeline_mode = #tpu.pipeline_mode<synchronous>, transform_indices = @transform_3, window_bounds = array<i64: 16, 16>}, {pipeline_mode = #tpu.pipeline_mode<synchronous>, transform_indices = @transform_4, window_bounds = array<i64: 2, 16>}, {pipeline_mode = #tpu.pipeline_mode<synchronous>, transform_indices = @transform_5, window_bounds = array<i64: 1, 32>}, {pipeline_mode = #tpu.pipeline_mode<synchronous>, transform_indices = @transform_6, window_bounds = array<i64: 1, 32>}, {pipeline_mode = #tpu.pipeline_mode<synchronous>, transform_indices = @transform_7, window_bounds = array<i64: 32, 32>}, {pipeline_mode = #tpu.pipeline_mode<synchronous>, transform_indices = @transform_8, window_bounds = array<i64: 2, 1, 32>}, {pipeline_mode = #tpu.pipeline_mode<synchronous>, transform_indices = @transform_9, window_bounds = array<i64: 2, 1, 32>}, {pipeline_mode = #tpu.pipeline_mode<synchronous>, transform_indices = @transform_10, window_bounds = array<i64: 2, 32, 96>}, {pipeline_mode = #tpu.pipeline_mode<synchronous>, transform_indices = @transform_11, window_bounds = array<i64: 2, 1, 96>}, {pipeline_mode = #tpu.pipeline_mode<synchronous>, transform_indices = @transform_12, window_bounds = array<i64: 2, 32, 32>}, {pipeline_mode = #tpu.pipeline_mode<synchronous>, transform_indices = @transform_13, window_bounds = array<i64: 2, 1, 32>}, {pipeline_mode = #tpu.pipeline_mode<synchronous>, transform_indices = @transform_14, window_bounds = array<i64: 2, 1, 32>}, {pipeline_mode = #tpu.pipeline_mode<synchronous>, transform_indices = @transform_15, window_bounds = array<i64: 2, 1, 32>}, {pipeline_mode = #tpu.pipeline_mode<synchronous>, transform_indices = @transform_16, window_bounds = array<i64: 2, 32, 128>}, {pipeline_mode = #tpu.pipeline_mode<synchronous>, transform_indices = @transform_17, window_bounds = array<i64: 2, 1, 128>}, {pipeline_mode = #tpu.pipeline_mode<synchronous>, transform_indices = @transform_18, window_bounds = array<i64: 2, 128, 32>}, {pipeline_mode = #tpu.pipeline_mode<synchronous>, transform_indices = @transform_19, window_bounds = array<i64: 2, 1, 32>}, {pipeline_mode = #tpu.pipeline_mode<synchronous>, transform_indices = @transform_20, window_bounds = array<i64: 2, 32>}]} {
    %c0 = arith.constant 0 : index
    %c0_0 = arith.constant 0 : index
    %0 = vector.load %arg1[%c0, %c0_0] : memref<16x32xf32, #tpu.memory_space<vmem>>, vector<16x32xf32>
    %c0_1 = arith.constant 0 : index
    %c0_2 = arith.constant 0 : index
    %1 = vector.load %arg4[%c0_1, %c0_2] : memref<16x16xf32, #tpu.memory_space<vmem>>, vector<16x16xf32>
    %c0_3 = arith.constant 0 : index
    %c0_4 = arith.constant 0 : index
    %2 = vector.load %arg3[%c0_3, %c0_4] : memref<16x1xf32, #tpu.memory_space<vmem>>, vector<16x1xf32>
    %cst = arith.constant 5.000000e-01 : f32
    %3 = vector.broadcast %cst : f32 to vector<16x1xf32>
    %4 = arith.cmpf ogt, %2, %3 : vector<16x1xf32>
    %c0_5 = arith.constant 0 : index
    %c0_6 = arith.constant 0 : index
    %c0_7 = arith.constant 0 : index
    %5 = vector.load %arg9[%c0_5, %c0_6, %c0_7] : memref<2x1x32xf32, #tpu.memory_space<vmem>>, vector<1x1x32xf32>
    %6 = vector.shape_cast %5 : vector<1x1x32xf32> to vector<1x32xf32>
    %c0_8 = arith.constant 0 : index
    %c0_9 = arith.constant 0 : index
    %c0_10 = arith.constant 0 : index
    %7 = vector.load %arg10[%c0_8, %c0_9, %c0_10] : memref<2x1x32xf32, #tpu.memory_space<vmem>>, vector<1x1x32xf32>
    %8 = vector.shape_cast %7 : vector<1x1x32xf32> to vector<1x32xf32>
    %cst_11 = arith.constant dense<0.000000e+00> : vector<16xf32>
    %9 = vector.multi_reduction <add>, %0, %cst_11 [1] : vector<16x32xf32> to vector<16xf32>
    %10 = vector.shape_cast %9 : vector<16xf32> to vector<16x1xf32>
    %cst_12 = arith.constant 3.200000e+01 : f32
    %11 = vector.broadcast %cst_12 : f32 to vector<16x1xf32>
    %12 = arith.divf %10, %11 : vector<16x1xf32>
    %13 = vector.broadcast %12 : vector<16x1xf32> to vector<16x32xf32>
    %14 = arith.subf %0, %13 : vector<16x32xf32>
    %15 = arith.mulf %14, %14 : vector<16x32xf32>
    %cst_13 = arith.constant dense<0.000000e+00> : vector<16xf32>
    %16 = vector.multi_reduction <add>, %15, %cst_13 [1] : vector<16x32xf32> to vector<16xf32>
    %17 = vector.shape_cast %16 : vector<16xf32> to vector<16x1xf32>
    %cst_14 = arith.constant 3.200000e+01 : f32
    %18 = vector.broadcast %cst_14 : f32 to vector<16x1xf32>
    %19 = arith.divf %17, %18 : vector<16x1xf32>
    %20 = vector.broadcast %12 : vector<16x1xf32> to vector<16x32xf32>
    %21 = arith.subf %0, %20 : vector<16x32xf32>
    %cst_15 = arith.constant 9.99999974E-6 : f32
    %22 = vector.broadcast %cst_15 : f32 to vector<16x1xf32>
    %23 = arith.addf %19, %22 : vector<16x1xf32>
    %24 = math.rsqrt %23 : vector<16x1xf32>
    %25 = vector.broadcast %24 : vector<16x1xf32> to vector<16x32xf32>
    %26 = arith.mulf %21, %25 : vector<16x32xf32>
    %27 = vector.broadcast %6 : vector<1x32xf32> to vector<16x32xf32>
    %28 = arith.mulf %26, %27 : vector<16x32xf32>
    %29 = vector.broadcast %8 : vector<1x32xf32> to vector<16x32xf32>
    %30 = arith.addf %28, %29 : vector<16x32xf32>
    %31 = arith.truncf %30 : vector<16x32xf32> to vector<16x32xbf16>
    %c0_16 = arith.constant 0 : index
    %c0_17 = arith.constant 0 : index
    %c0_18 = arith.constant 0 : index
    %32 = vector.load %arg11[%c0_16, %c0_17, %c0_18] : memref<2x32x96xbf16, #tpu.memory_space<vmem>>, vector<1x32x96xbf16>
    %33 = vector.shape_cast %32 : vector<1x32x96xbf16> to vector<32x96xbf16>
    %cst_19 = arith.constant dense<0.000000e+00> : vector<16x96xf32>
    %34 = tpu.matmul %31, %33, %cst_19 {dimension_numbers = #tpu.dot_dimension_numbers<[1], [0], [0], [1], [0, 0, 1, 1], [], []>} : vector<16x32xbf16>, vector<32x96xbf16>, vector<16x96xf32> -> vector<16x96xf32>
    %c0_20 = arith.constant 0 : index
    %c0_21 = arith.constant 0 : index
    %c0_22 = arith.constant 0 : index
    %35 = vector.load %arg12[%c0_20, %c0_21, %c0_22] : memref<2x1x96xf32, #tpu.memory_space<vmem>>, vector<1x1x96xf32>
    %36 = vector.shape_cast %35 : vector<1x1x96xf32> to vector<1x96xf32>
    %37 = vector.broadcast %36 : vector<1x96xf32> to vector<16x96xf32>
    %38 = arith.addf %34, %37 : vector<16x96xf32>
    %39 = vector.extract_strided_slice %38 {offsets = [0, 0], sizes = [16, 8], strides = [1, 1]} : vector<16x96xf32> to vector<16x8xf32>
    %40 = arith.truncf %39 : vector<16x8xf32> to vector<16x8xbf16>
    %41 = vector.extract_strided_slice %38 {offsets = [0, 32], sizes = [16, 8], strides = [1, 1]} : vector<16x96xf32> to vector<16x8xf32>
    %42 = arith.truncf %41 : vector<16x8xf32> to vector<16x8xbf16>
    %43 = vector.extract_strided_slice %38 {offsets = [0, 64], sizes = [16, 8], strides = [1, 1]} : vector<16x96xf32> to vector<16x8xf32>
    %44 = arith.truncf %43 : vector<16x8xf32> to vector<16x8xbf16>
    %cst_23 = arith.constant dense<0.000000e+00> : vector<16x16xf32>
    %45 = tpu.matmul %40, %42, %cst_23 {dimension_numbers = #tpu.dot_dimension_numbers<[1], [1], [0], [0], [0, 0, 1, 0], [], []>} : vector<16x8xbf16>, vector<16x8xbf16>, vector<16x16xf32> -> vector<16x16xf32>
    %46 = arith.addf %45, %1 : vector<16x16xf32>
    %cst_24 = arith.constant dense<0xFF800000> : vector<16xf32>
    %47 = vector.multi_reduction <maximumf>, %46, %cst_24 [1] : vector<16x16xf32> to vector<16xf32>
    %48 = vector.shape_cast %47 : vector<16xf32> to vector<16x1xf32>
    %49 = vector.broadcast %48 : vector<16x1xf32> to vector<16x16xf32>
    %50 = arith.subf %46, %49 : vector<16x16xf32>
    %51 = math.exp %50 : vector<16x16xf32>
    %cst_25 = arith.constant dense<0.000000e+00> : vector<16xf32>
    %52 = vector.multi_reduction <add>, %51, %cst_25 [1] : vector<16x16xf32> to vector<16xf32>
    %53 = vector.shape_cast %52 : vector<16xf32> to vector<16x1xf32>
    %54 = tpu.reciprocal %53 {approx = true} : vector<16x1xf32> -> vector<16x1xf32>
    %55 = vector.broadcast %54 : vector<16x1xf32> to vector<16x16xf32>
    %56 = arith.mulf %51, %55 : vector<16x16xf32>
    %57 = arith.truncf %56 : vector<16x16xf32> to vector<16x16xbf16>
    %cst_26 = arith.constant dense<0.000000e+00> : vector<16x8xf32>
    %58 = tpu.matmul %57, %44, %cst_26 {dimension_numbers = #tpu.dot_dimension_numbers<[1], [0], [0], [1], [0, 0, 1, 1], [], []>} : vector<16x16xbf16>, vector<16x8xbf16>, vector<16x8xf32> -> vector<16x8xf32>
    %59 = vector.extract_strided_slice %38 {offsets = [0, 8], sizes = [16, 8], strides = [1, 1]} : vector<16x96xf32> to vector<16x8xf32>
    %60 = arith.truncf %59 : vector<16x8xf32> to vector<16x8xbf16>
    %61 = vector.extract_strided_slice %38 {offsets = [0, 40], sizes = [16, 8], strides = [1, 1]} : vector<16x96xf32> to vector<16x8xf32>
    %62 = arith.truncf %61 : vector<16x8xf32> to vector<16x8xbf16>
    %63 = vector.extract_strided_slice %38 {offsets = [0, 72], sizes = [16, 8], strides = [1, 1]} : vector<16x96xf32> to vector<16x8xf32>
    %64 = arith.truncf %63 : vector<16x8xf32> to vector<16x8xbf16>
    %cst_27 = arith.constant dense<0.000000e+00> : vector<16x16xf32>
    %65 = tpu.matmul %60, %62, %cst_27 {dimension_numbers = #tpu.dot_dimension_numbers<[1], [1], [0], [0], [0, 0, 1, 0], [], []>} : vector<16x8xbf16>, vector<16x8xbf16>, vector<16x16xf32> -> vector<16x16xf32>
    %66 = arith.addf %65, %1 : vector<16x16xf32>
    %cst_28 = arith.constant dense<0xFF800000> : vector<16xf32>
    %67 = vector.multi_reduction <maximumf>, %66, %cst_28 [1] : vector<16x16xf32> to vector<16xf32>
    %68 = vector.shape_cast %67 : vector<16xf32> to vector<16x1xf32>
    %69 = vector.broadcast %68 : vector<16x1xf32> to vector<16x16xf32>
    %70 = arith.subf %66, %69 : vector<16x16xf32>
    %71 = math.exp %70 : vector<16x16xf32>
    %cst_29 = arith.constant dense<0.000000e+00> : vector<16xf32>
    %72 = vector.multi_reduction <add>, %71, %cst_29 [1] : vector<16x16xf32> to vector<16xf32>
    %73 = vector.shape_cast %72 : vector<16xf32> to vector<16x1xf32>
    %74 = tpu.reciprocal %73 {approx = true} : vector<16x1xf32> -> vector<16x1xf32>
    %75 = vector.broadcast %74 : vector<16x1xf32> to vector<16x16xf32>
    %76 = arith.mulf %71, %75 : vector<16x16xf32>
    %77 = arith.truncf %76 : vector<16x16xf32> to vector<16x16xbf16>
    %cst_30 = arith.constant dense<0.000000e+00> : vector<16x8xf32>
    %78 = tpu.matmul %77, %64, %cst_30 {dimension_numbers = #tpu.dot_dimension_numbers<[1], [0], [0], [1], [0, 0, 1, 1], [], []>} : vector<16x16xbf16>, vector<16x8xbf16>, vector<16x8xf32> -> vector<16x8xf32>
    %79 = vector.extract_strided_slice %38 {offsets = [0, 16], sizes = [16, 8], strides = [1, 1]} : vector<16x96xf32> to vector<16x8xf32>
    %80 = arith.truncf %79 : vector<16x8xf32> to vector<16x8xbf16>
    %81 = vector.extract_strided_slice %38 {offsets = [0, 48], sizes = [16, 8], strides = [1, 1]} : vector<16x96xf32> to vector<16x8xf32>
    %82 = arith.truncf %81 : vector<16x8xf32> to vector<16x8xbf16>
    %83 = vector.extract_strided_slice %38 {offsets = [0, 80], sizes = [16, 8], strides = [1, 1]} : vector<16x96xf32> to vector<16x8xf32>
    %84 = arith.truncf %83 : vector<16x8xf32> to vector<16x8xbf16>
    %cst_31 = arith.constant dense<0.000000e+00> : vector<16x16xf32>
    %85 = tpu.matmul %80, %82, %cst_31 {dimension_numbers = #tpu.dot_dimension_numbers<[1], [1], [0], [0], [0, 0, 1, 0], [], []>} : vector<16x8xbf16>, vector<16x8xbf16>, vector<16x16xf32> -> vector<16x16xf32>
    %86 = arith.addf %85, %1 : vector<16x16xf32>
    %cst_32 = arith.constant dense<0xFF800000> : vector<16xf32>
    %87 = vector.multi_reduction <maximumf>, %86, %cst_32 [1] : vector<16x16xf32> to vector<16xf32>
    %88 = vector.shape_cast %87 : vector<16xf32> to vector<16x1xf32>
    %89 = vector.broadcast %88 : vector<16x1xf32> to vector<16x16xf32>
    %90 = arith.subf %86, %89 : vector<16x16xf32>
    %91 = math.exp %90 : vector<16x16xf32>
    %cst_33 = arith.constant dense<0.000000e+00> : vector<16xf32>
    %92 = vector.multi_reduction <add>, %91, %cst_33 [1] : vector<16x16xf32> to vector<16xf32>
    %93 = vector.shape_cast %92 : vector<16xf32> to vector<16x1xf32>
    %94 = tpu.reciprocal %93 {approx = true} : vector<16x1xf32> -> vector<16x1xf32>
    %95 = vector.broadcast %94 : vector<16x1xf32> to vector<16x16xf32>
    %96 = arith.mulf %91, %95 : vector<16x16xf32>
    %97 = arith.truncf %96 : vector<16x16xf32> to vector<16x16xbf16>
    %cst_34 = arith.constant dense<0.000000e+00> : vector<16x8xf32>
    %98 = tpu.matmul %97, %84, %cst_34 {dimension_numbers = #tpu.dot_dimension_numbers<[1], [0], [0], [1], [0, 0, 1, 1], [], []>} : vector<16x16xbf16>, vector<16x8xbf16>, vector<16x8xf32> -> vector<16x8xf32>
    %99 = vector.extract_strided_slice %38 {offsets = [0, 24], sizes = [16, 8], strides = [1, 1]} : vector<16x96xf32> to vector<16x8xf32>
    %100 = arith.truncf %99 : vector<16x8xf32> to vector<16x8xbf16>
    %101 = vector.extract_strided_slice %38 {offsets = [0, 56], sizes = [16, 8], strides = [1, 1]} : vector<16x96xf32> to vector<16x8xf32>
    %102 = arith.truncf %101 : vector<16x8xf32> to vector<16x8xbf16>
    %103 = vector.extract_strided_slice %38 {offsets = [0, 88], sizes = [16, 8], strides = [1, 1]} : vector<16x96xf32> to vector<16x8xf32>
    %104 = arith.truncf %103 : vector<16x8xf32> to vector<16x8xbf16>
    %cst_35 = arith.constant dense<0.000000e+00> : vector<16x16xf32>
    %105 = tpu.matmul %100, %102, %cst_35 {dimension_numbers = #tpu.dot_dimension_numbers<[1], [1], [0], [0], [0, 0, 1, 0], [], []>} : vector<16x8xbf16>, vector<16x8xbf16>, vector<16x16xf32> -> vector<16x16xf32>
    %106 = arith.addf %105, %1 : vector<16x16xf32>
    %cst_36 = arith.constant dense<0xFF800000> : vector<16xf32>
    %107 = vector.multi_reduction <maximumf>, %106, %cst_36 [1] : vector<16x16xf32> to vector<16xf32>
    %108 = vector.shape_cast %107 : vector<16xf32> to vector<16x1xf32>
    %109 = vector.broadcast %108 : vector<16x1xf32> to vector<16x16xf32>
    %110 = arith.subf %106, %109 : vector<16x16xf32>
    %111 = math.exp %110 : vector<16x16xf32>
    %cst_37 = arith.constant dense<0.000000e+00> : vector<16xf32>
    %112 = vector.multi_reduction <add>, %111, %cst_37 [1] : vector<16x16xf32> to vector<16xf32>
    %113 = vector.shape_cast %112 : vector<16xf32> to vector<16x1xf32>
    %114 = tpu.reciprocal %113 {approx = true} : vector<16x1xf32> -> vector<16x1xf32>
    %115 = vector.broadcast %114 : vector<16x1xf32> to vector<16x16xf32>
    %116 = arith.mulf %111, %115 : vector<16x16xf32>
    %117 = arith.truncf %116 : vector<16x16xf32> to vector<16x16xbf16>
    %cst_38 = arith.constant dense<0.000000e+00> : vector<16x8xf32>
    %118 = tpu.matmul %117, %104, %cst_38 {dimension_numbers = #tpu.dot_dimension_numbers<[1], [0], [0], [1], [0, 0, 1, 1], [], []>} : vector<16x16xbf16>, vector<16x8xbf16>, vector<16x8xf32> -> vector<16x8xf32>
    %119 = tpu.concatenate %58, %78, %98, %118 in 1 : vector<16x8xf32>, vector<16x8xf32>, vector<16x8xf32>, vector<16x8xf32> -> vector<16x32xf32>
    %120 = arith.truncf %119 : vector<16x32xf32> to vector<16x32xbf16>
    %c0_39 = arith.constant 0 : index
    %c0_40 = arith.constant 0 : index
    %c0_41 = arith.constant 0 : index
    %121 = vector.load %arg13[%c0_39, %c0_40, %c0_41] : memref<2x32x32xbf16, #tpu.memory_space<vmem>>, vector<1x32x32xbf16>
    %122 = vector.shape_cast %121 : vector<1x32x32xbf16> to vector<32x32xbf16>
    %cst_42 = arith.constant dense<0.000000e+00> : vector<16x32xf32>
    %123 = tpu.matmul %120, %122, %cst_42 {dimension_numbers = #tpu.dot_dimension_numbers<[1], [0], [0], [1], [0, 0, 1, 1], [], []>} : vector<16x32xbf16>, vector<32x32xbf16>, vector<16x32xf32> -> vector<16x32xf32>
    %c0_43 = arith.constant 0 : index
    %c0_44 = arith.constant 0 : index
    %c0_45 = arith.constant 0 : index
    %124 = vector.load %arg14[%c0_43, %c0_44, %c0_45] : memref<2x1x32xf32, #tpu.memory_space<vmem>>, vector<1x1x32xf32>
    %125 = vector.shape_cast %124 : vector<1x1x32xf32> to vector<1x32xf32>
    %126 = vector.broadcast %125 : vector<1x32xf32> to vector<16x32xf32>
    %127 = arith.addf %123, %126 : vector<16x32xf32>
    %128 = arith.addf %0, %127 : vector<16x32xf32>
    %c0_46 = arith.constant 0 : index
    %c0_47 = arith.constant 0 : index
    %c0_48 = arith.constant 0 : index
    %129 = vector.load %arg15[%c0_46, %c0_47, %c0_48] : memref<2x1x32xf32, #tpu.memory_space<vmem>>, vector<1x1x32xf32>
    %130 = vector.shape_cast %129 : vector<1x1x32xf32> to vector<1x32xf32>
    %c0_49 = arith.constant 0 : index
    %c0_50 = arith.constant 0 : index
    %c0_51 = arith.constant 0 : index
    %131 = vector.load %arg16[%c0_49, %c0_50, %c0_51] : memref<2x1x32xf32, #tpu.memory_space<vmem>>, vector<1x1x32xf32>
    %132 = vector.shape_cast %131 : vector<1x1x32xf32> to vector<1x32xf32>
    %cst_52 = arith.constant dense<0.000000e+00> : vector<16xf32>
    %133 = vector.multi_reduction <add>, %128, %cst_52 [1] : vector<16x32xf32> to vector<16xf32>
    %134 = vector.shape_cast %133 : vector<16xf32> to vector<16x1xf32>
    %cst_53 = arith.constant 3.200000e+01 : f32
    %135 = vector.broadcast %cst_53 : f32 to vector<16x1xf32>
    %136 = arith.divf %134, %135 : vector<16x1xf32>
    %137 = vector.broadcast %136 : vector<16x1xf32> to vector<16x32xf32>
    %138 = arith.subf %128, %137 : vector<16x32xf32>
    %139 = arith.mulf %138, %138 : vector<16x32xf32>
    %cst_54 = arith.constant dense<0.000000e+00> : vector<16xf32>
    %140 = vector.multi_reduction <add>, %139, %cst_54 [1] : vector<16x32xf32> to vector<16xf32>
    %141 = vector.shape_cast %140 : vector<16xf32> to vector<16x1xf32>
    %cst_55 = arith.constant 3.200000e+01 : f32
    %142 = vector.broadcast %cst_55 : f32 to vector<16x1xf32>
    %143 = arith.divf %141, %142 : vector<16x1xf32>
    %144 = vector.broadcast %136 : vector<16x1xf32> to vector<16x32xf32>
    %145 = arith.subf %128, %144 : vector<16x32xf32>
    %cst_56 = arith.constant 9.99999974E-6 : f32
    %146 = vector.broadcast %cst_56 : f32 to vector<16x1xf32>
    %147 = arith.addf %143, %146 : vector<16x1xf32>
    %148 = math.rsqrt %147 : vector<16x1xf32>
    %149 = vector.broadcast %148 : vector<16x1xf32> to vector<16x32xf32>
    %150 = arith.mulf %145, %149 : vector<16x32xf32>
    %151 = vector.broadcast %130 : vector<1x32xf32> to vector<16x32xf32>
    %152 = arith.mulf %150, %151 : vector<16x32xf32>
    %153 = vector.broadcast %132 : vector<1x32xf32> to vector<16x32xf32>
    %154 = arith.addf %152, %153 : vector<16x32xf32>
    %155 = arith.truncf %154 : vector<16x32xf32> to vector<16x32xbf16>
    %c0_57 = arith.constant 0 : index
    %c0_58 = arith.constant 0 : index
    %c0_59 = arith.constant 0 : index
    %156 = vector.load %arg17[%c0_57, %c0_58, %c0_59] : memref<2x32x128xbf16, #tpu.memory_space<vmem>>, vector<1x32x128xbf16>
    %157 = vector.shape_cast %156 : vector<1x32x128xbf16> to vector<32x128xbf16>
    %cst_60 = arith.constant dense<0.000000e+00> : vector<16x128xf32>
    %158 = tpu.matmul %155, %157, %cst_60 {dimension_numbers = #tpu.dot_dimension_numbers<[1], [0], [0], [1], [0, 0, 1, 1], [], []>} : vector<16x32xbf16>, vector<32x128xbf16>, vector<16x128xf32> -> vector<16x128xf32>
    %c0_61 = arith.constant 0 : index
    %c0_62 = arith.constant 0 : index
    %c0_63 = arith.constant 0 : index
    %159 = vector.load %arg18[%c0_61, %c0_62, %c0_63] : memref<2x1x128xf32, #tpu.memory_space<vmem>>, vector<1x1x128xf32>
    %160 = vector.shape_cast %159 : vector<1x1x128xf32> to vector<1x128xf32>
    %161 = vector.broadcast %160 : vector<1x128xf32> to vector<16x128xf32>
    %162 = arith.addf %158, %161 : vector<16x128xf32>
    %cst_64 = arith.constant 1.702000e+00 : f32
    %163 = vector.broadcast %cst_64 : f32 to vector<16x128xf32>
    %164 = arith.mulf %163, %162 : vector<16x128xf32>
    %165 = arith.negf %164 : vector<16x128xf32>
    %166 = math.exp %165 : vector<16x128xf32>
    %cst_65 = arith.constant 1.000000e+00 : f32
    %167 = vector.broadcast %cst_65 : f32 to vector<16x128xf32>
    %168 = arith.addf %167, %166 : vector<16x128xf32>
    %169 = arith.divf %167, %168 : vector<16x128xf32>
    %170 = arith.mulf %162, %169 : vector<16x128xf32>
    %171 = arith.truncf %170 : vector<16x128xf32> to vector<16x128xbf16>
    %c0_66 = arith.constant 0 : index
    %c0_67 = arith.constant 0 : index
    %c0_68 = arith.constant 0 : index
    %172 = vector.load %arg19[%c0_66, %c0_67, %c0_68] : memref<2x128x32xbf16, #tpu.memory_space<vmem>>, vector<1x128x32xbf16>
    %173 = vector.shape_cast %172 : vector<1x128x32xbf16> to vector<128x32xbf16>
    %cst_69 = arith.constant dense<0.000000e+00> : vector<16x32xf32>
    %174 = tpu.matmul %171, %173, %cst_69 {dimension_numbers = #tpu.dot_dimension_numbers<[1], [0], [0], [1], [0, 0, 1, 1], [], []>} : vector<16x128xbf16>, vector<128x32xbf16>, vector<16x32xf32> -> vector<16x32xf32>
    %175 = arith.addf %128, %174 : vector<16x32xf32>
    %c0_70 = arith.constant 0 : index
    %c0_71 = arith.constant 0 : index
    %c0_72 = arith.constant 0 : index
    %176 = vector.load %arg20[%c0_70, %c0_71, %c0_72] : memref<2x1x32xf32, #tpu.memory_space<vmem>>, vector<1x1x32xf32>
    %177 = vector.shape_cast %176 : vector<1x1x32xf32> to vector<1x32xf32>
    %178 = vector.broadcast %177 : vector<1x32xf32> to vector<16x32xf32>
    %179 = arith.addf %175, %178 : vector<16x32xf32>
    %c0_73 = arith.constant 0 : index
    %c0_74 = arith.constant 0 : index
    %c0_75 = arith.constant 0 : index
    %180 = vector.load %arg2[%c0_73, %c0_74, %c0_75] : memref<1x16x32xf32, #tpu.memory_space<vmem>>, vector<1x16x32xf32>
    %181 = vector.shape_cast %180 : vector<1x16x32xf32> to vector<16x32xf32>
    %182 = vector.shape_cast %4 : vector<16x1xi1> to vector<16x1xi1>
    %183 = vector.broadcast %182 : vector<16x1xi1> to vector<16x32xi1>
    %184 = arith.select %183, %181, %179 : vector<16x32xi1>, vector<16x32xf32>
    %c1 = arith.constant 1 : index
    %c0_76 = arith.constant 0 : index
    %c0_77 = arith.constant 0 : index
    %185 = vector.load %arg9[%c1, %c0_76, %c0_77] : memref<2x1x32xf32, #tpu.memory_space<vmem>>, vector<1x1x32xf32>
    %186 = vector.shape_cast %185 : vector<1x1x32xf32> to vector<1x32xf32>
    %c1_78 = arith.constant 1 : index
    %c0_79 = arith.constant 0 : index
    %c0_80 = arith.constant 0 : index
    %187 = vector.load %arg10[%c1_78, %c0_79, %c0_80] : memref<2x1x32xf32, #tpu.memory_space<vmem>>, vector<1x1x32xf32>
    %188 = vector.shape_cast %187 : vector<1x1x32xf32> to vector<1x32xf32>
    %cst_81 = arith.constant dense<0.000000e+00> : vector<16xf32>
    %189 = vector.multi_reduction <add>, %184, %cst_81 [1] : vector<16x32xf32> to vector<16xf32>
    %190 = vector.shape_cast %189 : vector<16xf32> to vector<16x1xf32>
    %cst_82 = arith.constant 3.200000e+01 : f32
    %191 = vector.broadcast %cst_82 : f32 to vector<16x1xf32>
    %192 = arith.divf %190, %191 : vector<16x1xf32>
    %193 = vector.broadcast %192 : vector<16x1xf32> to vector<16x32xf32>
    %194 = arith.subf %184, %193 : vector<16x32xf32>
    %195 = arith.mulf %194, %194 : vector<16x32xf32>
    %cst_83 = arith.constant dense<0.000000e+00> : vector<16xf32>
    %196 = vector.multi_reduction <add>, %195, %cst_83 [1] : vector<16x32xf32> to vector<16xf32>
    %197 = vector.shape_cast %196 : vector<16xf32> to vector<16x1xf32>
    %cst_84 = arith.constant 3.200000e+01 : f32
    %198 = vector.broadcast %cst_84 : f32 to vector<16x1xf32>
    %199 = arith.divf %197, %198 : vector<16x1xf32>
    %200 = vector.broadcast %192 : vector<16x1xf32> to vector<16x32xf32>
    %201 = arith.subf %184, %200 : vector<16x32xf32>
    %cst_85 = arith.constant 9.99999974E-6 : f32
    %202 = vector.broadcast %cst_85 : f32 to vector<16x1xf32>
    %203 = arith.addf %199, %202 : vector<16x1xf32>
    %204 = math.rsqrt %203 : vector<16x1xf32>
    %205 = vector.broadcast %204 : vector<16x1xf32> to vector<16x32xf32>
    %206 = arith.mulf %201, %205 : vector<16x32xf32>
    %207 = vector.broadcast %186 : vector<1x32xf32> to vector<16x32xf32>
    %208 = arith.mulf %206, %207 : vector<16x32xf32>
    %209 = vector.broadcast %188 : vector<1x32xf32> to vector<16x32xf32>
    %210 = arith.addf %208, %209 : vector<16x32xf32>
    %211 = arith.truncf %210 : vector<16x32xf32> to vector<16x32xbf16>
    %c1_86 = arith.constant 1 : index
    %c0_87 = arith.constant 0 : index
    %c0_88 = arith.constant 0 : index
    %212 = vector.load %arg11[%c1_86, %c0_87, %c0_88] : memref<2x32x96xbf16, #tpu.memory_space<vmem>>, vector<1x32x96xbf16>
    %213 = vector.shape_cast %212 : vector<1x32x96xbf16> to vector<32x96xbf16>
    %cst_89 = arith.constant dense<0.000000e+00> : vector<16x96xf32>
    %214 = tpu.matmul %211, %213, %cst_89 {dimension_numbers = #tpu.dot_dimension_numbers<[1], [0], [0], [1], [0, 0, 1, 1], [], []>} : vector<16x32xbf16>, vector<32x96xbf16>, vector<16x96xf32> -> vector<16x96xf32>
    %c1_90 = arith.constant 1 : index
    %c0_91 = arith.constant 0 : index
    %c0_92 = arith.constant 0 : index
    %215 = vector.load %arg12[%c1_90, %c0_91, %c0_92] : memref<2x1x96xf32, #tpu.memory_space<vmem>>, vector<1x1x96xf32>
    %216 = vector.shape_cast %215 : vector<1x1x96xf32> to vector<1x96xf32>
    %217 = vector.broadcast %216 : vector<1x96xf32> to vector<16x96xf32>
    %218 = arith.addf %214, %217 : vector<16x96xf32>
    %219 = vector.extract_strided_slice %218 {offsets = [0, 0], sizes = [16, 8], strides = [1, 1]} : vector<16x96xf32> to vector<16x8xf32>
    %220 = arith.truncf %219 : vector<16x8xf32> to vector<16x8xbf16>
    %221 = vector.extract_strided_slice %218 {offsets = [0, 32], sizes = [16, 8], strides = [1, 1]} : vector<16x96xf32> to vector<16x8xf32>
    %222 = arith.truncf %221 : vector<16x8xf32> to vector<16x8xbf16>
    %223 = vector.extract_strided_slice %218 {offsets = [0, 64], sizes = [16, 8], strides = [1, 1]} : vector<16x96xf32> to vector<16x8xf32>
    %224 = arith.truncf %223 : vector<16x8xf32> to vector<16x8xbf16>
    %cst_93 = arith.constant dense<0.000000e+00> : vector<16x16xf32>
    %225 = tpu.matmul %220, %222, %cst_93 {dimension_numbers = #tpu.dot_dimension_numbers<[1], [1], [0], [0], [0, 0, 1, 0], [], []>} : vector<16x8xbf16>, vector<16x8xbf16>, vector<16x16xf32> -> vector<16x16xf32>
    %226 = arith.addf %225, %1 : vector<16x16xf32>
    %cst_94 = arith.constant dense<0xFF800000> : vector<16xf32>
    %227 = vector.multi_reduction <maximumf>, %226, %cst_94 [1] : vector<16x16xf32> to vector<16xf32>
    %228 = vector.shape_cast %227 : vector<16xf32> to vector<16x1xf32>
    %229 = vector.broadcast %228 : vector<16x1xf32> to vector<16x16xf32>
    %230 = arith.subf %226, %229 : vector<16x16xf32>
    %231 = math.exp %230 : vector<16x16xf32>
    %cst_95 = arith.constant dense<0.000000e+00> : vector<16xf32>
    %232 = vector.multi_reduction <add>, %231, %cst_95 [1] : vector<16x16xf32> to vector<16xf32>
    %233 = vector.shape_cast %232 : vector<16xf32> to vector<16x1xf32>
    %234 = tpu.reciprocal %233 {approx = true} : vector<16x1xf32> -> vector<16x1xf32>
    %235 = vector.broadcast %234 : vector<16x1xf32> to vector<16x16xf32>
    %236 = arith.mulf %231, %235 : vector<16x16xf32>
    %237 = arith.truncf %236 : vector<16x16xf32> to vector<16x16xbf16>
    %cst_96 = arith.constant dense<0.000000e+00> : vector<16x8xf32>
    %238 = tpu.matmul %237, %224, %cst_96 {dimension_numbers = #tpu.dot_dimension_numbers<[1], [0], [0], [1], [0, 0, 1, 1], [], []>} : vector<16x16xbf16>, vector<16x8xbf16>, vector<16x8xf32> -> vector<16x8xf32>
    %239 = vector.extract_strided_slice %218 {offsets = [0, 8], sizes = [16, 8], strides = [1, 1]} : vector<16x96xf32> to vector<16x8xf32>
    %240 = arith.truncf %239 : vector<16x8xf32> to vector<16x8xbf16>
    %241 = vector.extract_strided_slice %218 {offsets = [0, 40], sizes = [16, 8], strides = [1, 1]} : vector<16x96xf32> to vector<16x8xf32>
    %242 = arith.truncf %241 : vector<16x8xf32> to vector<16x8xbf16>
    %243 = vector.extract_strided_slice %218 {offsets = [0, 72], sizes = [16, 8], strides = [1, 1]} : vector<16x96xf32> to vector<16x8xf32>
    %244 = arith.truncf %243 : vector<16x8xf32> to vector<16x8xbf16>
    %cst_97 = arith.constant dense<0.000000e+00> : vector<16x16xf32>
    %245 = tpu.matmul %240, %242, %cst_97 {dimension_numbers = #tpu.dot_dimension_numbers<[1], [1], [0], [0], [0, 0, 1, 0], [], []>} : vector<16x8xbf16>, vector<16x8xbf16>, vector<16x16xf32> -> vector<16x16xf32>
    %246 = arith.addf %245, %1 : vector<16x16xf32>
    %cst_98 = arith.constant dense<0xFF800000> : vector<16xf32>
    %247 = vector.multi_reduction <maximumf>, %246, %cst_98 [1] : vector<16x16xf32> to vector<16xf32>
    %248 = vector.shape_cast %247 : vector<16xf32> to vector<16x1xf32>
    %249 = vector.broadcast %248 : vector<16x1xf32> to vector<16x16xf32>
    %250 = arith.subf %246, %249 : vector<16x16xf32>
    %251 = math.exp %250 : vector<16x16xf32>
    %cst_99 = arith.constant dense<0.000000e+00> : vector<16xf32>
    %252 = vector.multi_reduction <add>, %251, %cst_99 [1] : vector<16x16xf32> to vector<16xf32>
    %253 = vector.shape_cast %252 : vector<16xf32> to vector<16x1xf32>
    %254 = tpu.reciprocal %253 {approx = true} : vector<16x1xf32> -> vector<16x1xf32>
    %255 = vector.broadcast %254 : vector<16x1xf32> to vector<16x16xf32>
    %256 = arith.mulf %251, %255 : vector<16x16xf32>
    %257 = arith.truncf %256 : vector<16x16xf32> to vector<16x16xbf16>
    %cst_100 = arith.constant dense<0.000000e+00> : vector<16x8xf32>
    %258 = tpu.matmul %257, %244, %cst_100 {dimension_numbers = #tpu.dot_dimension_numbers<[1], [0], [0], [1], [0, 0, 1, 1], [], []>} : vector<16x16xbf16>, vector<16x8xbf16>, vector<16x8xf32> -> vector<16x8xf32>
    %259 = vector.extract_strided_slice %218 {offsets = [0, 16], sizes = [16, 8], strides = [1, 1]} : vector<16x96xf32> to vector<16x8xf32>
    %260 = arith.truncf %259 : vector<16x8xf32> to vector<16x8xbf16>
    %261 = vector.extract_strided_slice %218 {offsets = [0, 48], sizes = [16, 8], strides = [1, 1]} : vector<16x96xf32> to vector<16x8xf32>
    %262 = arith.truncf %261 : vector<16x8xf32> to vector<16x8xbf16>
    %263 = vector.extract_strided_slice %218 {offsets = [0, 80], sizes = [16, 8], strides = [1, 1]} : vector<16x96xf32> to vector<16x8xf32>
    %264 = arith.truncf %263 : vector<16x8xf32> to vector<16x8xbf16>
    %cst_101 = arith.constant dense<0.000000e+00> : vector<16x16xf32>
    %265 = tpu.matmul %260, %262, %cst_101 {dimension_numbers = #tpu.dot_dimension_numbers<[1], [1], [0], [0], [0, 0, 1, 0], [], []>} : vector<16x8xbf16>, vector<16x8xbf16>, vector<16x16xf32> -> vector<16x16xf32>
    %266 = arith.addf %265, %1 : vector<16x16xf32>
    %cst_102 = arith.constant dense<0xFF800000> : vector<16xf32>
    %267 = vector.multi_reduction <maximumf>, %266, %cst_102 [1] : vector<16x16xf32> to vector<16xf32>
    %268 = vector.shape_cast %267 : vector<16xf32> to vector<16x1xf32>
    %269 = vector.broadcast %268 : vector<16x1xf32> to vector<16x16xf32>
    %270 = arith.subf %266, %269 : vector<16x16xf32>
    %271 = math.exp %270 : vector<16x16xf32>
    %cst_103 = arith.constant dense<0.000000e+00> : vector<16xf32>
    %272 = vector.multi_reduction <add>, %271, %cst_103 [1] : vector<16x16xf32> to vector<16xf32>
    %273 = vector.shape_cast %272 : vector<16xf32> to vector<16x1xf32>
    %274 = tpu.reciprocal %273 {approx = true} : vector<16x1xf32> -> vector<16x1xf32>
    %275 = vector.broadcast %274 : vector<16x1xf32> to vector<16x16xf32>
    %276 = arith.mulf %271, %275 : vector<16x16xf32>
    %277 = arith.truncf %276 : vector<16x16xf32> to vector<16x16xbf16>
    %cst_104 = arith.constant dense<0.000000e+00> : vector<16x8xf32>
    %278 = tpu.matmul %277, %264, %cst_104 {dimension_numbers = #tpu.dot_dimension_numbers<[1], [0], [0], [1], [0, 0, 1, 1], [], []>} : vector<16x16xbf16>, vector<16x8xbf16>, vector<16x8xf32> -> vector<16x8xf32>
    %279 = vector.extract_strided_slice %218 {offsets = [0, 24], sizes = [16, 8], strides = [1, 1]} : vector<16x96xf32> to vector<16x8xf32>
    %280 = arith.truncf %279 : vector<16x8xf32> to vector<16x8xbf16>
    %281 = vector.extract_strided_slice %218 {offsets = [0, 56], sizes = [16, 8], strides = [1, 1]} : vector<16x96xf32> to vector<16x8xf32>
    %282 = arith.truncf %281 : vector<16x8xf32> to vector<16x8xbf16>
    %283 = vector.extract_strided_slice %218 {offsets = [0, 88], sizes = [16, 8], strides = [1, 1]} : vector<16x96xf32> to vector<16x8xf32>
    %284 = arith.truncf %283 : vector<16x8xf32> to vector<16x8xbf16>
    %cst_105 = arith.constant dense<0.000000e+00> : vector<16x16xf32>
    %285 = tpu.matmul %280, %282, %cst_105 {dimension_numbers = #tpu.dot_dimension_numbers<[1], [1], [0], [0], [0, 0, 1, 0], [], []>} : vector<16x8xbf16>, vector<16x8xbf16>, vector<16x16xf32> -> vector<16x16xf32>
    %286 = arith.addf %285, %1 : vector<16x16xf32>
    %cst_106 = arith.constant dense<0xFF800000> : vector<16xf32>
    %287 = vector.multi_reduction <maximumf>, %286, %cst_106 [1] : vector<16x16xf32> to vector<16xf32>
    %288 = vector.shape_cast %287 : vector<16xf32> to vector<16x1xf32>
    %289 = vector.broadcast %288 : vector<16x1xf32> to vector<16x16xf32>
    %290 = arith.subf %286, %289 : vector<16x16xf32>
    %291 = math.exp %290 : vector<16x16xf32>
    %cst_107 = arith.constant dense<0.000000e+00> : vector<16xf32>
    %292 = vector.multi_reduction <add>, %291, %cst_107 [1] : vector<16x16xf32> to vector<16xf32>
    %293 = vector.shape_cast %292 : vector<16xf32> to vector<16x1xf32>
    %294 = tpu.reciprocal %293 {approx = true} : vector<16x1xf32> -> vector<16x1xf32>
    %295 = vector.broadcast %294 : vector<16x1xf32> to vector<16x16xf32>
    %296 = arith.mulf %291, %295 : vector<16x16xf32>
    %297 = arith.truncf %296 : vector<16x16xf32> to vector<16x16xbf16>
    %cst_108 = arith.constant dense<0.000000e+00> : vector<16x8xf32>
    %298 = tpu.matmul %297, %284, %cst_108 {dimension_numbers = #tpu.dot_dimension_numbers<[1], [0], [0], [1], [0, 0, 1, 1], [], []>} : vector<16x16xbf16>, vector<16x8xbf16>, vector<16x8xf32> -> vector<16x8xf32>
    %299 = tpu.concatenate %238, %258, %278, %298 in 1 : vector<16x8xf32>, vector<16x8xf32>, vector<16x8xf32>, vector<16x8xf32> -> vector<16x32xf32>
    %300 = arith.truncf %299 : vector<16x32xf32> to vector<16x32xbf16>
    %c1_109 = arith.constant 1 : index
    %c0_110 = arith.constant 0 : index
    %c0_111 = arith.constant 0 : index
    %301 = vector.load %arg13[%c1_109, %c0_110, %c0_111] : memref<2x32x32xbf16, #tpu.memory_space<vmem>>, vector<1x32x32xbf16>
    %302 = vector.shape_cast %301 : vector<1x32x32xbf16> to vector<32x32xbf16>
    %cst_112 = arith.constant dense<0.000000e+00> : vector<16x32xf32>
    %303 = tpu.matmul %300, %302, %cst_112 {dimension_numbers = #tpu.dot_dimension_numbers<[1], [0], [0], [1], [0, 0, 1, 1], [], []>} : vector<16x32xbf16>, vector<32x32xbf16>, vector<16x32xf32> -> vector<16x32xf32>
    %c1_113 = arith.constant 1 : index
    %c0_114 = arith.constant 0 : index
    %c0_115 = arith.constant 0 : index
    %304 = vector.load %arg14[%c1_113, %c0_114, %c0_115] : memref<2x1x32xf32, #tpu.memory_space<vmem>>, vector<1x1x32xf32>
    %305 = vector.shape_cast %304 : vector<1x1x32xf32> to vector<1x32xf32>
    %306 = vector.broadcast %305 : vector<1x32xf32> to vector<16x32xf32>
    %307 = arith.addf %303, %306 : vector<16x32xf32>
    %308 = arith.addf %184, %307 : vector<16x32xf32>
    %c1_116 = arith.constant 1 : index
    %c0_117 = arith.constant 0 : index
    %c0_118 = arith.constant 0 : index
    %309 = vector.load %arg15[%c1_116, %c0_117, %c0_118] : memref<2x1x32xf32, #tpu.memory_space<vmem>>, vector<1x1x32xf32>
    %310 = vector.shape_cast %309 : vector<1x1x32xf32> to vector<1x32xf32>
    %c1_119 = arith.constant 1 : index
    %c0_120 = arith.constant 0 : index
    %c0_121 = arith.constant 0 : index
    %311 = vector.load %arg16[%c1_119, %c0_120, %c0_121] : memref<2x1x32xf32, #tpu.memory_space<vmem>>, vector<1x1x32xf32>
    %312 = vector.shape_cast %311 : vector<1x1x32xf32> to vector<1x32xf32>
    %cst_122 = arith.constant dense<0.000000e+00> : vector<16xf32>
    %313 = vector.multi_reduction <add>, %308, %cst_122 [1] : vector<16x32xf32> to vector<16xf32>
    %314 = vector.shape_cast %313 : vector<16xf32> to vector<16x1xf32>
    %cst_123 = arith.constant 3.200000e+01 : f32
    %315 = vector.broadcast %cst_123 : f32 to vector<16x1xf32>
    %316 = arith.divf %314, %315 : vector<16x1xf32>
    %317 = vector.broadcast %316 : vector<16x1xf32> to vector<16x32xf32>
    %318 = arith.subf %308, %317 : vector<16x32xf32>
    %319 = arith.mulf %318, %318 : vector<16x32xf32>
    %cst_124 = arith.constant dense<0.000000e+00> : vector<16xf32>
    %320 = vector.multi_reduction <add>, %319, %cst_124 [1] : vector<16x32xf32> to vector<16xf32>
    %321 = vector.shape_cast %320 : vector<16xf32> to vector<16x1xf32>
    %cst_125 = arith.constant 3.200000e+01 : f32
    %322 = vector.broadcast %cst_125 : f32 to vector<16x1xf32>
    %323 = arith.divf %321, %322 : vector<16x1xf32>
    %324 = vector.broadcast %316 : vector<16x1xf32> to vector<16x32xf32>
    %325 = arith.subf %308, %324 : vector<16x32xf32>
    %cst_126 = arith.constant 9.99999974E-6 : f32
    %326 = vector.broadcast %cst_126 : f32 to vector<16x1xf32>
    %327 = arith.addf %323, %326 : vector<16x1xf32>
    %328 = math.rsqrt %327 : vector<16x1xf32>
    %329 = vector.broadcast %328 : vector<16x1xf32> to vector<16x32xf32>
    %330 = arith.mulf %325, %329 : vector<16x32xf32>
    %331 = vector.broadcast %310 : vector<1x32xf32> to vector<16x32xf32>
    %332 = arith.mulf %330, %331 : vector<16x32xf32>
    %333 = vector.broadcast %312 : vector<1x32xf32> to vector<16x32xf32>
    %334 = arith.addf %332, %333 : vector<16x32xf32>
    %335 = arith.truncf %334 : vector<16x32xf32> to vector<16x32xbf16>
    %c1_127 = arith.constant 1 : index
    %c0_128 = arith.constant 0 : index
    %c0_129 = arith.constant 0 : index
    %336 = vector.load %arg17[%c1_127, %c0_128, %c0_129] : memref<2x32x128xbf16, #tpu.memory_space<vmem>>, vector<1x32x128xbf16>
    %337 = vector.shape_cast %336 : vector<1x32x128xbf16> to vector<32x128xbf16>
    %cst_130 = arith.constant dense<0.000000e+00> : vector<16x128xf32>
    %338 = tpu.matmul %335, %337, %cst_130 {dimension_numbers = #tpu.dot_dimension_numbers<[1], [0], [0], [1], [0, 0, 1, 1], [], []>} : vector<16x32xbf16>, vector<32x128xbf16>, vector<16x128xf32> -> vector<16x128xf32>
    %c1_131 = arith.constant 1 : index
    %c0_132 = arith.constant 0 : index
    %c0_133 = arith.constant 0 : index
    %339 = vector.load %arg18[%c1_131, %c0_132, %c0_133] : memref<2x1x128xf32, #tpu.memory_space<vmem>>, vector<1x1x128xf32>
    %340 = vector.shape_cast %339 : vector<1x1x128xf32> to vector<1x128xf32>
    %341 = vector.broadcast %340 : vector<1x128xf32> to vector<16x128xf32>
    %342 = arith.addf %338, %341 : vector<16x128xf32>
    %cst_134 = arith.constant 1.702000e+00 : f32
    %343 = vector.broadcast %cst_134 : f32 to vector<16x128xf32>
    %344 = arith.mulf %343, %342 : vector<16x128xf32>
    %345 = arith.negf %344 : vector<16x128xf32>
    %346 = math.exp %345 : vector<16x128xf32>
    %cst_135 = arith.constant 1.000000e+00 : f32
    %347 = vector.broadcast %cst_135 : f32 to vector<16x128xf32>
    %348 = arith.addf %347, %346 : vector<16x128xf32>
    %349 = arith.divf %347, %348 : vector<16x128xf32>
    %350 = arith.mulf %342, %349 : vector<16x128xf32>
    %351 = arith.truncf %350 : vector<16x128xf32> to vector<16x128xbf16>
    %c1_136 = arith.constant 1 : index
    %c0_137 = arith.constant 0 : index
    %c0_138 = arith.constant 0 : index
    %352 = vector.load %arg19[%c1_136, %c0_137, %c0_138] : memref<2x128x32xbf16, #tpu.memory_space<vmem>>, vector<1x128x32xbf16>
    %353 = vector.shape_cast %352 : vector<1x128x32xbf16> to vector<128x32xbf16>
    %cst_139 = arith.constant dense<0.000000e+00> : vector<16x32xf32>
    %354 = tpu.matmul %351, %353, %cst_139 {dimension_numbers = #tpu.dot_dimension_numbers<[1], [0], [0], [1], [0, 0, 1, 1], [], []>} : vector<16x128xbf16>, vector<128x32xbf16>, vector<16x32xf32> -> vector<16x32xf32>
    %355 = arith.addf %308, %354 : vector<16x32xf32>
    %c1_140 = arith.constant 1 : index
    %c0_141 = arith.constant 0 : index
    %c0_142 = arith.constant 0 : index
    %356 = vector.load %arg20[%c1_140, %c0_141, %c0_142] : memref<2x1x32xf32, #tpu.memory_space<vmem>>, vector<1x1x32xf32>
    %357 = vector.shape_cast %356 : vector<1x1x32xf32> to vector<1x32xf32>
    %358 = vector.broadcast %357 : vector<1x32xf32> to vector<16x32xf32>
    %359 = arith.addf %355, %358 : vector<16x32xf32>
    %c0_143 = arith.constant 0 : index
    %c0_144 = arith.constant 0 : index
    %360 = vector.load %arg5[%c0_143, %c0_144] : memref<2x16xf32, #tpu.memory_space<vmem>>, vector<2x16xf32>
    %cst_145 = arith.constant dense<0.000000e+00> : vector<2x32xf32>
    %361 = tpu.matmul %360, %359, %cst_145 {dimension_numbers = #tpu.dot_dimension_numbers<[1], [0], [0], [1], [0, 0, 1, 1], [], []>} : vector<2x16xf32>, vector<16x32xf32>, vector<2x32xf32> -> vector<2x32xf32>
    %c0_146 = arith.constant 0 : index
    %c0_147 = arith.constant 0 : index
    %362 = vector.load %arg6[%c0_146, %c0_147] : memref<1x32xf32, #tpu.memory_space<vmem>>, vector<1x32xf32>
    %c0_148 = arith.constant 0 : index
    %c0_149 = arith.constant 0 : index
    %363 = vector.load %arg7[%c0_148, %c0_149] : memref<1x32xf32, #tpu.memory_space<vmem>>, vector<1x32xf32>
    %cst_150 = arith.constant dense<0.000000e+00> : vector<2xf32>
    %364 = vector.multi_reduction <add>, %361, %cst_150 [1] : vector<2x32xf32> to vector<2xf32>
    %365 = vector.shape_cast %364 : vector<2xf32> to vector<2x1xf32>
    %cst_151 = arith.constant 3.200000e+01 : f32
    %366 = vector.broadcast %cst_151 : f32 to vector<2x1xf32>
    %367 = arith.divf %365, %366 : vector<2x1xf32>
    %368 = vector.broadcast %367 : vector<2x1xf32> to vector<2x32xf32>
    %369 = arith.subf %361, %368 : vector<2x32xf32>
    %370 = arith.mulf %369, %369 : vector<2x32xf32>
    %cst_152 = arith.constant dense<0.000000e+00> : vector<2xf32>
    %371 = vector.multi_reduction <add>, %370, %cst_152 [1] : vector<2x32xf32> to vector<2xf32>
    %372 = vector.shape_cast %371 : vector<2xf32> to vector<2x1xf32>
    %cst_153 = arith.constant 3.200000e+01 : f32
    %373 = vector.broadcast %cst_153 : f32 to vector<2x1xf32>
    %374 = arith.divf %372, %373 : vector<2x1xf32>
    %375 = vector.broadcast %367 : vector<2x1xf32> to vector<2x32xf32>
    %376 = arith.subf %361, %375 : vector<2x32xf32>
    %cst_154 = arith.constant 9.99999974E-6 : f32
    %377 = vector.broadcast %cst_154 : f32 to vector<2x1xf32>
    %378 = arith.addf %374, %377 : vector<2x1xf32>
    %379 = math.rsqrt %378 : vector<2x1xf32>
    %380 = vector.broadcast %379 : vector<2x1xf32> to vector<2x32xf32>
    %381 = arith.mulf %376, %380 : vector<2x32xf32>
    %382 = vector.broadcast %362 : vector<1x32xf32> to vector<2x32xf32>
    %383 = arith.mulf %381, %382 : vector<2x32xf32>
    %384 = vector.broadcast %363 : vector<1x32xf32> to vector<2x32xf32>
    %385 = arith.addf %383, %384 : vector<2x32xf32>
    %386 = arith.truncf %385 : vector<2x32xf32> to vector<2x32xbf16>
    %c0_155 = arith.constant 0 : index
    %c0_156 = arith.constant 0 : index
    %387 = vector.load %arg8[%c0_155, %c0_156] : memref<32x32xbf16, #tpu.memory_space<vmem>>, vector<32x32xbf16>
    %cst_157 = arith.constant dense<0.000000e+00> : vector<2x32xf32>
    %388 = tpu.matmul %386, %387, %cst_157 {dimension_numbers = #tpu.dot_dimension_numbers<[1], [0], [0], [1], [0, 0, 1, 1], [], []>} : vector<2x32xbf16>, vector<32x32xbf16>, vector<2x32xf32> -> vector<2x32xf32>
    %c0_158 = arith.constant 0 : index
    %c0_159 = arith.constant 0 : index
    %389 = vector.load %arg21[%c0_158, %c0_159] : memref<2x32xf32, #tpu.memory_space<vmem>>, vector<2x32xf32>
    tpu.vector_store %arg21[%c0_158, %c0_159], %388 {strides = array<i32>} : memref<2x32xf32, #tpu.memory_space<vmem>>, vector<2x32xf32>,
    return
  }
  func.func @transform_0(%arg0: i32) -> (i32, i32) {
    %c0_i32 = arith.constant 0 : i32
    %c0_i32_0 = arith.constant 0 : i32
    %c0_i32_1 = arith.constant 0 : i32
    return %c0_i32, %c0_i32_0 : i32, i32
  }
  func.func @transform_1(%arg0: i32) -> (i32, i32, i32) {
    %c0_i32 = arith.constant 0 : i32
    %c0_i32_0 = arith.constant 0 : i32
    %c0_i32_1 = arith.constant 0 : i32
    %c0_i32_2 = arith.constant 0 : i32
    return %c0_i32, %c0_i32_0, %c0_i32_1 : i32, i32, i32
  }
  func.func @transform_2(%arg0: i32) -> (i32, i32) {
    %c0_i32 = arith.constant 0 : i32
    %c0_i32_0 = arith.constant 0 : i32
    %c0_i32_1 = arith.constant 0 : i32
    return %c0_i32, %c0_i32_0 : i32, i32
  }
  func.func @transform_3(%arg0: i32) -> (i32, i32) {
    %c0_i32 = arith.constant 0 : i32
    %c0_i32_0 = arith.constant 0 : i32
    %c0_i32_1 = arith.constant 0 : i32
    return %c0_i32, %c0_i32_0 : i32, i32
  }
  func.func @transform_4(%arg0: i32) -> (i32, i32) {
    %c0_i32 = arith.constant 0 : i32
    %c0_i32_0 = arith.constant 0 : i32
    %c0_i32_1 = arith.constant 0 : i32
    return %c0_i32, %c0_i32_0 : i32, i32
  }
  func.func @transform_5(%arg0: i32) -> (i32, i32) {
    %c0_i32 = arith.constant 0 : i32
    %c0_i32_0 = arith.constant 0 : i32
    %c0_i32_1 = arith.constant 0 : i32
    return %c0_i32, %c0_i32_0 : i32, i32
  }
  func.func @transform_6(%arg0: i32) -> (i32, i32) {
    %c0_i32 = arith.constant 0 : i32
    %c0_i32_0 = arith.constant 0 : i32
    %c0_i32_1 = arith.constant 0 : i32
    return %c0_i32, %c0_i32_0 : i32, i32
  }
  func.func @transform_7(%arg0: i32) -> (i32, i32) {
    %c0_i32 = arith.constant 0 : i32
    %c0_i32_0 = arith.constant 0 : i32
    %c0_i32_1 = arith.constant 0 : i32
    return %c0_i32, %c0_i32_0 : i32, i32
  }
  func.func @transform_8(%arg0: i32) -> (i32, i32, i32) {
    %c0_i32 = arith.constant 0 : i32
    %c0_i32_0 = arith.constant 0 : i32
    %c0_i32_1 = arith.constant 0 : i32
    %c0_i32_2 = arith.constant 0 : i32
    return %c0_i32, %c0_i32_0, %c0_i32_1 : i32, i32, i32
  }
  func.func @transform_9(%arg0: i32) -> (i32, i32, i32) {
    %c0_i32 = arith.constant 0 : i32
    %c0_i32_0 = arith.constant 0 : i32
    %c0_i32_1 = arith.constant 0 : i32
    %c0_i32_2 = arith.constant 0 : i32
    return %c0_i32, %c0_i32_0, %c0_i32_1 : i32, i32, i32
  }
  func.func @transform_10(%arg0: i32) -> (i32, i32, i32) {
    %c0_i32 = arith.constant 0 : i32
    %c0_i32_0 = arith.constant 0 : i32
    %c0_i32_1 = arith.constant 0 : i32
    %c0_i32_2 = arith.constant 0 : i32
    return %c0_i32, %c0_i32_0, %c0_i32_1 : i32, i32, i32
  }
  func.func @transform_11(%arg0: i32) -> (i32, i32, i32) {
    %c0_i32 = arith.constant 0 : i32
    %c0_i32_0 = arith.constant 0 : i32
    %c0_i32_1 = arith.constant 0 : i32
    %c0_i32_2 = arith.constant 0 : i32
    return %c0_i32, %c0_i32_0, %c0_i32_1 : i32, i32, i32
  }
  func.func @transform_12(%arg0: i32) -> (i32, i32, i32) {
    %c0_i32 = arith.constant 0 : i32
    %c0_i32_0 = arith.constant 0 : i32
    %c0_i32_1 = arith.constant 0 : i32
    %c0_i32_2 = arith.constant 0 : i32
    return %c0_i32, %c0_i32_0, %c0_i32_1 : i32, i32, i32
  }
  func.func @transform_13(%arg0: i32) -> (i32, i32, i32) {
    %c0_i32 = arith.constant 0 : i32
    %c0_i32_0 = arith.constant 0 : i32
    %c0_i32_1 = arith.constant 0 : i32
    %c0_i32_2 = arith.constant 0 : i32
    return %c0_i32, %c0_i32_0, %c0_i32_1 : i32, i32, i32
  }
  func.func @transform_14(%arg0: i32) -> (i32, i32, i32) {
    %c0_i32 = arith.constant 0 : i32
    %c0_i32_0 = arith.constant 0 : i32
    %c0_i32_1 = arith.constant 0 : i32
    %c0_i32_2 = arith.constant 0 : i32
    return %c0_i32, %c0_i32_0, %c0_i32_1 : i32, i32, i32
  }
  func.func @transform_15(%arg0: i32) -> (i32, i32, i32) {
    %c0_i32 = arith.constant 0 : i32
    %c0_i32_0 = arith.constant 0 : i32
    %c0_i32_1 = arith.constant 0 : i32
    %c0_i32_2 = arith.constant 0 : i32
    return %c0_i32, %c0_i32_0, %c0_i32_1 : i32, i32, i32
  }
  func.func @transform_16(%arg0: i32) -> (i32, i32, i32) {
    %c0_i32 = arith.constant 0 : i32
    %c0_i32_0 = arith.constant 0 : i32
    %c0_i32_1 = arith.constant 0 : i32
    %c0_i32_2 = arith.constant 0 : i32
    return %c0_i32, %c0_i32_0, %c0_i32_1 : i32, i32, i32
  }
  func.func @transform_17(%arg0: i32) -> (i32, i32, i32) {
    %c0_i32 = arith.constant 0 : i32
    %c0_i32_0 = arith.constant 0 : i32
    %c0_i32_1 = arith.constant 0 : i32
    %c0_i32_2 = arith.constant 0 : i32
    return %c0_i32, %c0_i32_0, %c0_i32_1 : i32, i32, i32
  }
  func.func @transform_18(%arg0: i32) -> (i32, i32, i32) {
    %c0_i32 = arith.constant 0 : i32
    %c0_i32_0 = arith.constant 0 : i32
    %c0_i32_1 = arith.constant 0 : i32
    %c0_i32_2 = arith.constant 0 : i32
    return %c0_i32, %c0_i32_0, %c0_i32_1 : i32, i32, i32
  }
  func.func @transform_19(%arg0: i32) -> (i32, i32, i32) {
    %c0_i32 = arith.constant 0 : i32
    %c0_i32_0 = arith.constant 0 : i32
    %c0_i32_1 = arith.constant 0 : i32
    %c0_i32_2 = arith.constant 0 : i32
    return %c0_i32, %c0_i32_0, %c0_i32_1 : i32, i32, i32
  }
  func.func @transform_20(%arg0: i32) -> (i32, i32) {
    %c0_i32 = arith.constant 0 : i32
    %c0_i32_0 = arith.constant 0 : i32
    %c0_i32_1 = arith.constant 0 : i32
    return %c0_i32, %c0_i32_0 : i32, i32
  }
}

</mosaic_0001>

<llo_original>
// kernel: tpu_custom_call.1
$region0: #{tpu_custom_call.1}
  #allocation0 [shape = 'u32[]', space=smem, size = 0x4, offset = 0x4, fixed_abs, tag = 'smem constant byte address 0x4 - core index']
  #allocation1 [shape = 'u32[72,128]{1,0:T(1,128)}', space=vmem, size = 0x9000, scoped, tag = 'internal scratch']
  %s0 = inlined_call_operand.vmem [shape: f32[16,32], index: 0, kind: input, shape index: {}]
  %s1 = inlined_call_operand.vmem [shape: f32[1,16,32], index: 1, kind: input, shape index: {}]
  %s2 = inlined_call_operand.vmem [shape: f32[16,1], index: 2, kind: input, shape index: {}]
  %s3 = inlined_call_operand.vmem [shape: f32[16,16], index: 3, kind: input, shape index: {}]
  %s4 = inlined_call_operand.vmem [shape: f32[2,16], index: 4, kind: input, shape index: {}]
  %s5 = inlined_call_operand.hbm [shape: f32[1,32], index: 5, kind: input, shape index: {}]
  %s6 = inlined_call_operand.hbm [shape: f32[1,32], index: 6, kind: input, shape index: {}]
  %s7 = inlined_call_operand.vmem [shape: bf16[32,32], index: 7, kind: input, shape index: {}]
  %s8 = inlined_call_operand.hbm [shape: f32[2,1,32], index: 8, kind: input, shape index: {}]
  %s9 = inlined_call_operand.hbm [shape: f32[2,1,32], index: 9, kind: input, shape index: {}]
  %s10 = inlined_call_operand.vmem [shape: bf16[2,32,96], index: 10, kind: input, shape index: {}]
  %s11 = inlined_call_operand.hbm [shape: f32[2,1,96], index: 11, kind: input, shape index: {}]
  %s12 = inlined_call_operand.vmem [shape: bf16[2,32,32], index: 12, kind: input, shape index: {}]
  %s13 = inlined_call_operand.hbm [shape: f32[2,1,32], index: 13, kind: input, shape index: {}]
  %s14 = inlined_call_operand.hbm [shape: f32[2,1,32], index: 14, kind: input, shape index: {}]
  %s15 = inlined_call_operand.hbm [shape: f32[2,1,32], index: 15, kind: input, shape index: {}]
  %s16 = inlined_call_operand.vmem [shape: bf16[2,32,128], index: 16, kind: input, shape index: {}]
  %s17 = inlined_call_operand.hbm [shape: f32[2,1,128], index: 17, kind: input, shape index: {}]
  %s18 = inlined_call_operand.vmem [shape: bf16[2,128,32], index: 18, kind: input, shape index: {}]
  %s19 = inlined_call_operand.hbm [shape: f32[2,1,32], index: 19, kind: input, shape index: {}]
  %s20 = inlined_call_operand.hbm [shape: f32[2,32], index: 20, kind: output, shape index: {}]
  %s21 = sld [smem:[#allocation0]]
  $region130: #{tpu_custom_call.1} parent=0
    _
  %s23 = ssub.s32 1, %s21
  %s24 = scalar_select 0, %s23, %s21
  $region1: #{tpu_custom_call.1} parent=0
    #allocation2 [shape = 'u8[512]{0}', space=vmem, size = 0x400, scoped, tag = 'input window, operand 5, single buffered']
    #allocation3 [shape = 's32[1]{0}', space=sflag, size = 0x4, scoped, tag = 'scoped memory for tpu_custom_call.1']
    #allocation4 [shape = 's32[1]{0}', space=sflag, size = 0x4, scoped, tag = 'scoped memory for tpu_custom_call.1']
    #allocation5 [shape = 'u8[512]{0}', space=vmem, size = 0x400, scoped, tag = 'input window, operand 6, single buffered']
    #allocation6 [shape = 's32[1]{0}', space=sflag, size = 0x4, scoped, tag = 'scoped memory for tpu_custom_call.1']
    #allocation7 [shape = 'u8[1024]{0}', space=vmem, size = 0x400, scoped, tag = 'input window, operand 8, single buffered']
    #allocation8 [shape = 'u8[1024]{0}', space=vmem, size = 0x400, scoped, tag = 'input window, operand 9, single buffered']
    #allocation9 [shape = 's32[1]{0}', space=sflag, size = 0x4, scoped, tag = 'scoped memory for tpu_custom_call.1']
    #allocation10 [shape = 'u8[1024]{0}', space=vmem, size = 0x400, scoped, tag = 'input window, operand 11, single buffered']
    #allocation11 [shape = 'u8[1024]{0}', space=vmem, size = 0x400, scoped, tag = 'input window, operand 13, single buffered']
    #allocation12 [shape = 's32[1]{0}', space=sflag, size = 0x4, scoped, tag = 'scoped memory for tpu_custom_call.1']
    #allocation13 [shape = 'u8[1024]{0}', space=vmem, size = 0x400, scoped, tag = 'input window, operand 14, single buffered']
    #allocation14 [shape = 'u8[1024]{0}', space=vmem, size = 0x400, scoped, tag = 'input window, operand 15, single buffered']
    #allocation15 [shape = 's32[1]{0}', space=sflag, size = 0x4, scoped, tag = 'scoped memory for tpu_custom_call.1']
    #allocation16 [shape = 'u8[1024]{0}', space=vmem, size = 0x400, scoped, tag = 'input window, operand 17, single buffered']
    #allocation17 [shape = 'u8[1024]{0}', space=vmem, size = 0x400, scoped, tag = 'input window, operand 19, single buffered']
    #allocation18 [shape = 's32[1]{0}', space=sflag, size = 0x4, scoped, tag = 'scoped memory for tpu_custom_call.1']
    #allocation19 [shape = 'u8[1024]{0}', space=vmem, size = 0x400, scoped, tag = 'output window, operand 0, single buffered']
    %25 = vsyncpa [#allocation3], 0
    %26 = vsyncpa [#allocation6], 0
    %27 = vsyncpa [#allocation9], 0
    %28 = vsyncpa [#allocation12], 0
    %29 = vsyncpa [#allocation15], 0
    %30 = vsyncpa [#allocation18], 0
    %31 = vsyncpa [#allocation4], 0
    // Predicated region
    $region2: #{tpu_custom_call.1} parent=1 // pred_check
      _
    $region3: #{tpu_custom_call.1} parent=1 // pred_check_branch
      %33 = sbr.rel (0) target = $region5
    $region4: #{tpu_custom_call.1} parent=1 // pred_region
      _
    $region5: #{tpu_custom_call.1} parent=1 // pred_fallthru
      _
    // Predicated region
    $region6: #{tpu_custom_call.1} parent=1 // pred_check
      _
    $region7: #{tpu_custom_call.1} parent=1 // pred_check_branch
      %35 = sbr.rel (0) target = $region9
    $region8: #{tpu_custom_call.1} parent=1 // pred_region
      _
    $region9: #{tpu_custom_call.1} parent=1 // pred_fallthru
      _
    // Predicated region
    $region10: #{tpu_custom_call.1} parent=1 // pred_check
      _
    $region11: #{tpu_custom_call.1} parent=1 // pred_check_branch
      %37 = sbr.rel (0) target = $region13
    $region12: #{tpu_custom_call.1} parent=1 // pred_region
      _
    $region13: #{tpu_custom_call.1} parent=1 // pred_fallthru
      _
    // Predicated region
    $region14: #{tpu_custom_call.1} parent=1 // pred_check
      _
    $region15: #{tpu_custom_call.1} parent=1 // pred_check_branch
      %39 = sbr.rel (0) target = $region17
    $region16: #{tpu_custom_call.1} parent=1 // pred_region
      _
    $region17: #{tpu_custom_call.1} parent=1 // pred_fallthru
      _
    // Predicated region
    $region18: #{tpu_custom_call.1} parent=1 // pred_check
      _
    $region19: #{tpu_custom_call.1} parent=1 // pred_check_branch
      %41 = sbr.rel (0) target = $region21
    $region20: #{tpu_custom_call.1} parent=1 // pred_region
      _
    $region21: #{tpu_custom_call.1} parent=1 // pred_fallthru
      _
    // Predicated region
    $region22: #{tpu_custom_call.1} parent=1 // pred_check
      _
    $region23: #{tpu_custom_call.1} parent=1 // pred_check_branch
      %43 = sbr.rel (0) target = $region25
    $region24: #{tpu_custom_call.1} parent=1 // pred_region
      %45 = vsyncadd [#allocation3], 0
      %s47 = sshll.u32 %s5, 4
      %s48 = int_to_ptr.hbm [resolvable:$true] %s47
      %s49 = sshll.u32 [#allocation2], 4
      %s50 = int_to_ptr.vmem [resolvable:$true] %s49
      %52 = dma.hbm_to_vmem [thread:$0]  %s48, 16, %s50, [#allocation3]
    $region25: #{tpu_custom_call.1} parent=1 // pred_fallthru
      _
    // Predicated region
    $region26: #{tpu_custom_call.1} parent=1 // pred_check
      _
    $region27: #{tpu_custom_call.1} parent=1 // pred_check_branch
      %54 = sbr.rel (0) target = $region29
    $region28: #{tpu_custom_call.1} parent=1 // pred_region
      %56 = vsyncadd [#allocation6], 0
      %s58 = sshll.u32 %s6, 4
      %s59 = int_to_ptr.hbm [resolvable:$true] %s58
      %s60 = sshll.u32 [#allocation5], 4
      %s61 = int_to_ptr.vmem [resolvable:$true] %s60
      %63 = dma.hbm_to_vmem [thread:$0]  %s59, 16, %s61, [#allocation6]
    $region29: #{tpu_custom_call.1} parent=1 // pred_fallthru
      _
    // Predicated region
    $region30: #{tpu_custom_call.1} parent=1 // pred_check
      _
    $region31: #{tpu_custom_call.1} parent=1 // pred_check_branch
      %65 = sbr.rel (0) target = $region33
    $region32: #{tpu_custom_call.1} parent=1 // pred_region
      _
    $region33: #{tpu_custom_call.1} parent=1 // pred_fallthru
      _
    // Predicated region
    $region34: #{tpu_custom_call.1} parent=1 // pred_check
      _
    $region35: #{tpu_custom_call.1} parent=1 // pred_check_branch
      %67 = sbr.rel (0) target = $region37
    $region36: #{tpu_custom_call.1} parent=1 // pred_region
      %69 = vsyncadd [#allocation6], 0
      %s70 = sshll.u32 %s8, 4
      %s71 = int_to_ptr.hbm [resolvable:$true] %s70
      %s72 = sshll.u32 [#allocation7], 4
      %s73 = int_to_ptr.vmem [resolvable:$true] %s72
      %78 = dma.hbm_to_vmem [thread:$0]  %s71, 32, %s73, [#allocation6], 16, 16, 1
    $region37: #{tpu_custom_call.1} parent=1 // pred_fallthru
      _
    // Predicated region
    $region38: #{tpu_custom_call.1} parent=1 // pred_check
      _
    $region39: #{tpu_custom_call.1} parent=1 // pred_check_branch
      %80 = sbr.rel (0) target = $region41
    $region40: #{tpu_custom_call.1} parent=1 // pred_region
      %82 = vsyncadd [#allocation9], 0
      %s83 = sshll.u32 %s9, 4
      %s84 = int_to_ptr.hbm [resolvable:$true] %s83
      %s85 = sshll.u32 [#allocation8], 4
      %s86 = int_to_ptr.vmem [resolvable:$true] %s85
      %91 = dma.hbm_to_vmem [thread:$0]  %s84, 32, %s86, [#allocation9], 16, 16, 1
    $region41: #{tpu_custom_call.1} parent=1 // pred_fallthru
      _
    // Predicated region
    $region42: #{tpu_custom_call.1} parent=1 // pred_check
      _
    $region43: #{tpu_custom_call.1} parent=1 // pred_check_branch
      %93 = sbr.rel (0) target = $region45
    $region44: #{tpu_custom_call.1} parent=1 // pred_region
      _
    $region45: #{tpu_custom_call.1} parent=1 // pred_fallthru
      _
    // Predicated region
    $region46: #{tpu_custom_call.1} parent=1 // pred_check
      _
    $region47: #{tpu_custom_call.1} parent=1 // pred_check_branch
      %95 = sbr.rel (0) target = $region49
    $region48: #{tpu_custom_call.1} parent=1 // pred_region
      %97 = vsyncadd [#allocation9], 0
      %s98 = sshll.u32 %s11, 4
      %s99 = int_to_ptr.hbm [resolvable:$true] %s98
      %s100 = sshll.u32 [#allocation10], 4
      %s101 = int_to_ptr.vmem [resolvable:$true] %s100
      %106 = dma.hbm_to_vmem [thread:$0]  %s99, 32, %s101, [#allocation9], 16, 16, 1
    $region49: #{tpu_custom_call.1} parent=1 // pred_fallthru
      _
    // Predicated region
    $region50: #{tpu_custom_call.1} parent=1 // pred_check
      _
    $region51: #{tpu_custom_call.1} parent=1 // pred_check_branch
      %108 = sbr.rel (0) target = $region53
    $region52: #{tpu_custom_call.1} parent=1 // pred_region
      _
    $region53: #{tpu_custom_call.1} parent=1 // pred_fallthru
      _
    // Predicated region
    $region54: #{tpu_custom_call.1} parent=1 // pred_check
      _
    $region55: #{tpu_custom_call.1} parent=1 // pred_check_branch
      %110 = sbr.rel (0) target = $region57
    $region56: #{tpu_custom_call.1} parent=1 // pred_region
      %112 = vsyncadd [#allocation12], 0
      %s113 = sshll.u32 %s13, 4
      %s114 = int_to_ptr.hbm [resolvable:$true] %s113
      %s115 = sshll.u32 [#allocation11], 4
      %s116 = int_to_ptr.vmem [resolvable:$true] %s115
      %121 = dma.hbm_to_vmem [thread:$0]  %s114, 32, %s116, [#allocation12], 16, 16, 1
    $region57: #{tpu_custom_call.1} parent=1 // pred_fallthru
      _
    // Predicated region
    $region58: #{tpu_custom_call.1} parent=1 // pred_check
      _
    $region59: #{tpu_custom_call.1} parent=1 // pred_check_branch
      %123 = sbr.rel (0) target = $region61
    $region60: #{tpu_custom_call.1} parent=1 // pred_region
      %125 = vsyncadd [#allocation12], 0
      %s126 = sshll.u32 %s14, 4
      %s127 = int_to_ptr.hbm [resolvable:$true] %s126
      %s128 = sshll.u32 [#allocation13], 4
      %s129 = int_to_ptr.vmem [resolvable:$true] %s128
      %134 = dma.hbm_to_vmem [thread:$0]  %s127, 32, %s129, [#allocation12], 16, 16, 1
    $region61: #{tpu_custom_call.1} parent=1 // pred_fallthru
      _
    // Predicated region
    $region62: #{tpu_custom_call.1} parent=1 // pred_check
      _
    $region63: #{tpu_custom_call.1} parent=1 // pred_check_branch
      %136 = sbr.rel (0) target = $region65
    $region64: #{tpu_custom_call.1} parent=1 // pred_region
      %138 = vsyncadd [#allocation15], 0
      %s139 = sshll.u32 %s15, 4
      %s140 = int_to_ptr.hbm [resolvable:$true] %s139
      %s141 = sshll.u32 [#allocation14], 4
      %s142 = int_to_ptr.vmem [resolvable:$true] %s141
      %147 = dma.hbm_to_vmem [thread:$0]  %s140, 32, %s142, [#allocation15], 16, 16, 1
    $region65: #{tpu_custom_call.1} parent=1 // pred_fallthru
      _
    // Predicated region
    $region66: #{tpu_custom_call.1} parent=1 // pred_check
      _
    $region67: #{tpu_custom_call.1} parent=1 // pred_check_branch
      %149 = sbr.rel (0) target = $region69
    $region68: #{tpu_custom_call.1} parent=1 // pred_region
      _
    $region69: #{tpu_custom_call.1} parent=1 // pred_fallthru
      _
    // Predicated region
    $region70: #{tpu_custom_call.1} parent=1 // pred_check
      _
    $region71: #{tpu_custom_call.1} parent=1 // pred_check_branch
      %151 = sbr.rel (0) target = $region73
    $region72: #{tpu_custom_call.1} parent=1 // pred_region
      %153 = vsyncadd [#allocation15], 0
      %s154 = sshll.u32 %s17, 4
      %s155 = int_to_ptr.hbm [resolvable:$true] %s154
      %s156 = sshll.u32 [#allocation16], 4
      %s157 = int_to_ptr.vmem [resolvable:$true] %s156
      %162 = dma.hbm_to_vmem [thread:$0]  %s155, 32, %s157, [#allocation15], 16, 16, 1
    $region73: #{tpu_custom_call.1} parent=1 // pred_fallthru
      _
    // Predicated region
    $region74: #{tpu_custom_call.1} parent=1 // pred_check
      _
    $region75: #{tpu_custom_call.1} parent=1 // pred_check_branch
      %164 = sbr.rel (0) target = $region77
    $region76: #{tpu_custom_call.1} parent=1 // pred_region
      _
    $region77: #{tpu_custom_call.1} parent=1 // pred_fallthru
      _
    // Predicated region
    $region78: #{tpu_custom_call.1} parent=1 // pred_check
      _
    $region79: #{tpu_custom_call.1} parent=1 // pred_check_branch
      %166 = sbr.rel (0) target = $region81
    $region80: #{tpu_custom_call.1} parent=1 // pred_region
      %168 = vsyncadd [#allocation18], 0
      %s169 = sshll.u32 %s19, 4
      %s170 = int_to_ptr.hbm [resolvable:$true] %s169
      %s171 = sshll.u32 [#allocation17], 4
      %s172 = int_to_ptr.vmem [resolvable:$true] %s171
      %177 = dma.hbm_to_vmem [thread:$0]  %s170, 32, %s172, [#allocation18], 16, 16, 1
    $region81: #{tpu_custom_call.1} parent=1 // pred_fallthru
      _
    // Predicated region
    $region82: #{tpu_custom_call.1} parent=1 // pred_check
      _
    $region83: #{tpu_custom_call.1} parent=1 // pred_check_branch
      %179 = sbr.rel (0) target = $region85
    $region84: #{tpu_custom_call.1} parent=1 // pred_region
      %181 = dma.done [#allocation3], 16
    $region85: #{tpu_custom_call.1} parent=1 // pred_fallthru
      _
    // Predicated region
    $region86: #{tpu_custom_call.1} parent=1 // pred_check
      _
    $region87: #{tpu_custom_call.1} parent=1 // pred_check_branch
      %183 = sbr.rel (0) target = $region89
    $region88: #{tpu_custom_call.1} parent=1 // pred_region
      %185 = dma.done [#allocation6], 16
    $region89: #{tpu_custom_call.1} parent=1 // pred_fallthru
      _
    // Predicated region
    $region90: #{tpu_custom_call.1} parent=1 // pred_check
      _
    $region91: #{tpu_custom_call.1} parent=1 // pred_check_branch
      %187 = sbr.rel (0) target = $region93
    $region92: #{tpu_custom_call.1} parent=1 // pred_region
      %189 = dma.done [#allocation6], 32
    $region93: #{tpu_custom_call.1} parent=1 // pred_fallthru
      _
    // Predicated region
    $region94: #{tpu_custom_call.1} parent=1 // pred_check
      _
    $region95: #{tpu_custom_call.1} parent=1 // pred_check_branch
      %191 = sbr.rel (0) target = $region97
    $region96: #{tpu_custom_call.1} parent=1 // pred_region
      %193 = dma.done [#allocation9], 32
    $region97: #{tpu_custom_call.1} parent=1 // pred_fallthru
      _
    // Predicated region
    $region98: #{tpu_custom_call.1} parent=1 // pred_check
      _
    $region99: #{tpu_custom_call.1} parent=1 // pred_check_branch
      %195 = sbr.rel (0) target = $region101
    $region100: #{tpu_custom_call.1} parent=1 // pred_region
      %197 = dma.done [#allocation9], 32
    $region101: #{tpu_custom_call.1} parent=1 // pred_fallthru
      _
    // Predicated region
    $region102: #{tpu_custom_call.1} parent=1 // pred_check
      _
    $region103: #{tpu_custom_call.1} parent=1 // pred_check_branch
      %199 = sbr.rel (0) target = $region105
    $region104: #{tpu_custom_call.1} parent=1 // pred_region
      %201 = dma.done [#allocation12], 32
    $region105: #{tpu_custom_call.1} parent=1 // pred_fallthru
      _
    // Predicated region
    $region106: #{tpu_custom_call.1} parent=1 // pred_check
      _
    $region107: #{tpu_custom_call.1} parent=1 // pred_check_branch
      %203 = sbr.rel (0) target = $region109
    $region108: #{tpu_custom_call.1} parent=1 // pred_region
      %205 = dma.done [#allocation12], 32
    $region109: #{tpu_custom_call.1} parent=1 // pred_fallthru
      _
    // Predicated region
    $region110: #{tpu_custom_call.1} parent=1 // pred_check
      _
    $region111: #{tpu_custom_call.1} parent=1 // pred_check_branch
      %207 = sbr.rel (0) target = $region113
    $region112: #{tpu_custom_call.1} parent=1 // pred_region
      %209 = dma.done [#allocation15], 32
    $region113: #{tpu_custom_call.1} parent=1 // pred_fallthru
      _
    // Predicated region
    $region114: #{tpu_custom_call.1} parent=1 // pred_check
      _
    $region115: #{tpu_custom_call.1} parent=1 // pred_check_branch
      %211 = sbr.rel (0) target = $region117
    $region116: #{tpu_custom_call.1} parent=1 // pred_region
      %213 = dma.done [#allocation15], 32
    $region117: #{tpu_custom_call.1} parent=1 // pred_fallthru
      _
    // Predicated region
    $region118: #{tpu_custom_call.1} parent=1 // pred_check
      _
    $region119: #{tpu_custom_call.1} parent=1 // pred_check_branch
      %215 = sbr.rel (0) target = $region121
    $region120: #{tpu_custom_call.1} parent=1 // pred_region
      %217 = dma.done [#allocation18], 32
    $region121: #{tpu_custom_call.1} parent=1 // pred_fallthru
      _
    %v219 = vld [vmem:[%s0] sm:$0xff]
    %v220 = vld [vmem:[%s0 + $0x8] sm:$0xff]
    %v221 = vld [vmem:[%s3] sm:$0xff]
    %v222 = vld [vmem:[%s3 + $0x8] sm:$0xff]
    %v223 = vld [vmem:[%s2] sm:$0xff]
    %v224 = vld [vmem:[%s2 + $0x8] sm:$0xff]
    %vm225 = vcmp.gt.f32.partialorder %v223, 0.5
    %vm226 = vcmp.gt.f32.partialorder %v224, 0.5
    %v227 = vld [vmem:[#allocation7] sm:$0x1]
    %v228 = vld [vmem:[#allocation8] sm:$0x1]
    %vm229 = vcmask 261120
    %v230 = vsel %vm229, %v219, 0.0
    %231 = vadd.xlane.f32.xlu0 %v230
    %v232 = vpop.xlane.xlu0 %231
    %v233 = vsel %vm229, %v220, 0.0
    %234 = vadd.xlane.f32.xlu0 %v233
    %v235 = vpop.xlane.xlu0 %234
    %v236 = vrcp.pop 32.0
    %v237 = vmul.f32 32.0, %v236
    %v238 = vsub.f32 1.0, %v237
    %v239 = vmul.f32 %v236, %v238
    %v240 = vadd.f32 %v236, %v239
    %vm241 = vweird.f32 %v236
    %v242 = vsel %vm241, %v236, %v240
    %v243 = vmul.f32 %v232, %v242
    %v244 = vmul.f32 %v235, %v242
    %v245 = vsub.f32 %v219, %v243
    %v246 = vsub.f32 %v220, %v244
    %v247 = vmul.f32 %v245, %v245
    %v248 = vmul.f32 %v246, %v246
    %v249 = vsel %vm229, %v247, 0.0
    %250 = vadd.xlane.f32.xlu0 %v249
    %v251 = vpop.xlane.xlu0 %250
    %v252 = vsel %vm229, %v248, 0.0
    %253 = vadd.xlane.f32.xlu0 %v252
    %v254 = vpop.xlane.xlu0 %253
    %v255 = vmul.f32 %v251, %v242
    %v256 = vmul.f32 %v254, %v242
    %v257 = vadd.f32 %v255, 1e-05
    %v258 = vadd.f32 %v256, 1e-05
    %v259 = vrsqrt.pop %v257
    %v260 = vmul.f32 %v259, %v257
    %v261 = vmul.f32 %v260, %v259
    %v262 = vmul.f32 0.5, %v261
    %v263 = vsub.f32 1.5, %v262
    %v264 = vmul.f32 %v259, %v263
    %vm265 = vweird.f32 %v257
    %vm266 = vweird.f32 %v259
    %vm267 = vmor %vm265, %vm266
    %v268 = vsel %vm267, %v259, %v264
    %v269 = vrsqrt.pop %v258
    %v270 = vmul.f32 %v269, %v258
    %v271 = vmul.f32 %v270, %v269
    %v272 = vmul.f32 0.5, %v271
    %v273 = vsub.f32 1.5, %v272
    %v274 = vmul.f32 %v269, %v273
    %vm275 = vweird.f32 %v258
    %vm276 = vweird.f32 %v269
    %vm277 = vmor %vm275, %vm276
    %v278 = vsel %vm277, %v269, %v274
    %v279 = vmul.f32 %v245, %v268
    %v280 = vmul.f32 %v246, %v278
    %v282 = vperm.slane %v227, 0
    %v284 = vmul.f32 %v279, %v282
    %v285 = vmul.f32 %v280, %v282
    %v287 = vperm.slane %v228, 0
    %v289 = vadd.f32 %v284, %v287
    %v290 = vadd.f32 %v285, %v287
    %v291 = vpack.c.bf16 %v290, %v289
    %v292 = vld [vmem:[%s10] sm:$0xf]
    %v293 = vld [vmem:[%s10 + $0x4] sm:$0xf]
    %v294 = vld [vmem:[%s10 + $0x8] sm:$0xf]
    %v295 = vld [vmem:[%s10 + $0xc] sm:$0xf]
    %v296 = vld [vmem:[#allocation10] sm:$0x1]
    %v298 = vperm.slane %v296, 0
    %v304 = vunpack.c.l.b16 %v292
    %v305 = vunpack.c.l.b16 %v293
    %v306 = vunpack.c.l.b16 %v294
    %v307 = vunpack.c.l.b16 %v295
    %v308 = vpack.c.b16 %v305, %v304
    %v309 = vpack.c.b16 %v307, %v306
    %v313 = vsel %vm229, %v291, 0
    %315 = vmatpush.bf16.msra.mxu0 0
    %316 = vmatpush.bf16.msra.mxu0 0
    %317 = vmatpush.bf16.msra.mxu0 0
    %318 = vmatpush.bf16.msra.mxu0 0
    %319 = vmatpush.bf16.msra.mxu0 0
    %320 = vmatpush.bf16.msra.mxu0 0
    %321 = vmatpush.bf16.msra.mxu0 %v309
    %322 = vmatpush.bf16.msra.mxu0 %v308
    %323 = vmatmul.bf16.gmra.mxu0 %v313
    %v324 = vpop.f32.mrf.mxu0
    %v325 = vadd.f32 %v298, %v324
    %v326 = vpop.f32.mrf.mxu0
    %v327 = vadd.f32 %v298, %v326
    %328 = vdwg.mxu0
    %v329 = vpack.c.bf16 %v327, %v325
    %331 = vrot.lane.b32.xlu0 %v329, 96
    %v332 = vpop.permute.xlu0 %331
    %vm333 = vcmask 64512
    %v335 = vsel %vm333, %v329, 0
    %v338 = vsel %vm333, %v332, 0
    %340 = vmatpush.bf16.xpose.msra.mxu0 0
    %341 = vmatpush.bf16.xpose.msra.mxu0 0
    %342 = vmatpush.bf16.xpose.msra.mxu0 0
    %343 = vmatpush.bf16.xpose.msra.mxu0 0
    %344 = vmatpush.bf16.xpose.msra.mxu0 0
    %345 = vmatpush.bf16.xpose.msra.mxu0 0
    %346 = vmatpush.bf16.xpose.msra.mxu0 0
    %347 = vmatpush.bf16.xpose.msra.mxu0 %v338
    %348 = vmatmul.bf16.gmra.mxu0 %v335
    %v349 = vpop.f32.mrf.mxu0
    %v350 = vadd.f32 %v221, %v349
    %v351 = vpop.f32.mrf.mxu0
    %v352 = vadd.f32 %v222, %v351
    %353 = vdwg.mxu0
    %vm354 = vcmask 130048
    %v355 = vsel %vm354, %v350, -inf
    %356 = vmax.xlane.f32.xlu0 %v355
    %v357 = vpop.xlane.xlu0 %356
    %v358 = vsel %vm354, %v352, -inf
    %359 = vmax.xlane.f32.xlu0 %v358
    %v360 = vpop.xlane.xlu0 %359
    %v361 = vsub.f32 %v350, %v357
    %v362 = vsub.f32 %v352, %v360
    %v363 = vmul.f32 %v361, 1.442695
    %v364 = vpow.pop %v363
    %v365 = vmul.f32 %v362, 1.442695
    %v366 = vpow.pop %v365
    %v367 = vsel %vm354, %v364, 0.0
    %368 = vadd.xlane.f32.xlu0 %v367
    %v369 = vpop.xlane.xlu0 %368
    %v370 = vsel %vm354, %v366, 0.0
    %371 = vadd.xlane.f32.xlu0 %v370
    %v372 = vpop.xlane.xlu0 %371
    %v373 = vrcp.pop %v369
    %v374 = vrcp.pop %v372
    %v375 = vmul.f32 %v364, %v373
    %v376 = vmul.f32 %v366, %v374
    %v377 = vpack.c.bf16 %v376, %v375
    %378 = vrot.lane.b32.xlu0 %v329, 64
    %v379 = vpop.permute.xlu0 %378
    %v382 = vsel %vm354, %v377, 0
    %384 = vmatpush.bf16.msra.mxu0 0
    %385 = vmatpush.bf16.msra.mxu0 0
    %386 = vmatpush.bf16.msra.mxu0 0
    %387 = vmatpush.bf16.msra.mxu0 0
    %388 = vmatpush.bf16.msra.mxu0 0
    %389 = vmatpush.bf16.msra.mxu0 0
    %390 = vmatpush.bf16.msra.mxu0 0
    %391 = vmatpush.bf16.msra.mxu0 %v379
    %392 = vmatmul.bf16.gmra.mxu0 %v382
    %v393 = vpop.f32.mrf.mxu0
    %v394 = vadd.f32 0.0, %v393
    %v395 = vpop.f32.mrf.mxu0
    %v396 = vadd.f32 0.0, %v395
    %397 = vdwg.mxu0
    %398 = vrot.lane.b32.xlu0 %v329, 120
    %v399 = vpop.permute.xlu0 %398
    %400 = vrot.lane.b32.xlu0 %v329, 88
    %v401 = vpop.permute.xlu0 %400
    %v403 = vsel %vm333, %v399, 0
    %v406 = vsel %vm333, %v401, 0
    %408 = vmatpush.bf16.xpose.msra.mxu0 0
    %409 = vmatpush.bf16.xpose.msra.mxu0 0
    %410 = vmatpush.bf16.xpose.msra.mxu0 0
    %411 = vmatpush.bf16.xpose.msra.mxu0 0
    %412 = vmatpush.bf16.xpose.msra.mxu0 0
    %413 = vmatpush.bf16.xpose.msra.mxu0 0
    %414 = vmatpush.bf16.xpose.msra.mxu0 0
    %415 = vmatpush.bf16.xpose.msra.mxu0 %v406
    %416 = vmatmul.bf16.gmra.mxu0 %v403
    %v417 = vpop.f32.mrf.mxu0
    %v418 = vadd.f32 %v221, %v417
    %v419 = vpop.f32.mrf.mxu0
    %v420 = vadd.f32 %v222, %v419
    %421 = vdwg.mxu0
    %v422 = vsel %vm354, %v418, -inf
    %423 = vmax.xlane.f32.xlu0 %v422
    %v424 = vpop.xlane.xlu0 %423
    %v425 = vsel %vm354, %v420, -inf
    %426 = vmax.xlane.f32.xlu0 %v425
    %v427 = vpop.xlane.xlu0 %426
    %v428 = vsub.f32 %v418, %v424
    %v429 = vsub.f32 %v420, %v427
    %v430 = vmul.f32 %v428, 1.442695
    %v431 = vpow.pop %v430
    %v432 = vmul.f32 %v429, 1.442695
    %v433 = vpow.pop %v432
    %v434 = vsel %vm354, %v431, 0.0
    %435 = vadd.xlane.f32.xlu0 %v434
    %v436 = vpop.xlane.xlu0 %435
    %v437 = vsel %vm354, %v433, 0.0
    %438 = vadd.xlane.f32.xlu0 %v437
    %v439 = vpop.xlane.xlu0 %438
    %v440 = vrcp.pop %v436
    %v441 = vrcp.pop %v439
    %v442 = vmul.f32 %v431, %v440
    %v443 = vmul.f32 %v433, %v441
    %v444 = vpack.c.bf16 %v443, %v442
    %445 = vrot.lane.b32.xlu0 %v329, 56
    %v446 = vpop.permute.xlu0 %445
    %v449 = vsel %vm354, %v444, 0
    %451 = vmatpush.bf16.msra.mxu0 0
    %452 = vmatpush.bf16.msra.mxu0 0
    %453 = vmatpush.bf16.msra.mxu0 0
    %454 = vmatpush.bf16.msra.mxu0 0
    %455 = vmatpush.bf16.msra.mxu0 0
    %456 = vmatpush.bf16.msra.mxu0 0
    %457 = vmatpush.bf16.msra.mxu0 0
    %458 = vmatpush.bf16.msra.mxu0 %v446
    %459 = vmatmul.bf16.gmra.mxu0 %v449
    %v460 = vpop.f32.mrf.mxu0
    %v461 = vadd.f32 0.0, %v460
    %v462 = vpop.f32.mrf.mxu0
    %v463 = vadd.f32 0.0, %v462
    %464 = vdwg.mxu0
    %465 = vrot.lane.b32.xlu0 %v329, 112
    %v466 = vpop.permute.xlu0 %465
    %467 = vrot.lane.b32.xlu0 %v329, 80
    %v468 = vpop.permute.xlu0 %467
    %v470 = vsel %vm333, %v466, 0
    %v473 = vsel %vm333, %v468, 0
    %475 = vmatpush.bf16.xpose.msra.mxu0 0
    %476 = vmatpush.bf16.xpose.msra.mxu0 0
    %477 = vmatpush.bf16.xpose.msra.mxu0 0
    %478 = vmatpush.bf16.xpose.msra.mxu0 0
    %479 = vmatpush.bf16.xpose.msra.mxu0 0
    %480 = vmatpush.bf16.xpose.msra.mxu0 0
    %481 = vmatpush.bf16.xpose.msra.mxu0 0
    %482 = vmatpush.bf16.xpose.msra.mxu0 %v473
    %483 = vmatmul.bf16.gmra.mxu0 %v470
    %v484 = vpop.f32.mrf.mxu0
    %v485 = vadd.f32 %v221, %v484
    %v486 = vpop.f32.mrf.mxu0
    %v487 = vadd.f32 %v222, %v486
    %488 = vdwg.mxu0
    %v489 = vsel %vm354, %v485, -inf
    %490 = vmax.xlane.f32.xlu0 %v489
    %v491 = vpop.xlane.xlu0 %490
    %v492 = vsel %vm354, %v487, -inf
    %493 = vmax.xlane.f32.xlu0 %v492
    %v494 = vpop.xlane.xlu0 %493
    %v495 = vsub.f32 %v485, %v491
    %v496 = vsub.f32 %v487, %v494
    %v497 = vmul.f32 %v495, 1.442695
    %v498 = vpow.pop %v497
    %v499 = vmul.f32 %v496, 1.442695
    %v500 = vpow.pop %v499
    %v501 = vsel %vm354, %v498, 0.0
    %502 = vadd.xlane.f32.xlu0 %v501
    %v503 = vpop.xlane.xlu0 %502
    %v504 = vsel %vm354, %v500, 0.0
    %505 = vadd.xlane.f32.xlu0 %v504
    %v506 = vpop.xlane.xlu0 %505
    %v507 = vrcp.pop %v503
    %v508 = vrcp.pop %v506
    %v509 = vmul.f32 %v498, %v507
    %v510 = vmul.f32 %v500, %v508
    %v511 = vpack.c.bf16 %v510, %v509
    %512 = vrot.lane.b32.xlu0 %v329, 48
    %v513 = vpop.permute.xlu0 %512
    %v516 = vsel %vm354, %v511, 0
    %518 = vmatpush.bf16.msra.mxu0 0
    %519 = vmatpush.bf16.msra.mxu0 0
    %520 = vmatpush.bf16.msra.mxu0 0
    %521 = vmatpush.bf16.msra.mxu0 0
    %522 = vmatpush.bf16.msra.mxu0 0
    %523 = vmatpush.bf16.msra.mxu0 0
    %524 = vmatpush.bf16.msra.mxu0 0
    %525 = vmatpush.bf16.msra.mxu0 %v513
    %526 = vmatmul.bf16.gmra.mxu0 %v516
    %v527 = vpop.f32.mrf.mxu0
    %v528 = vadd.f32 0.0, %v527
    %v529 = vpop.f32.mrf.mxu0
    %v530 = vadd.f32 0.0, %v529
    %531 = vdwg.mxu0
    %532 = vrot.lane.b32.xlu0 %v329, 104
    %v533 = vpop.permute.xlu0 %532
    %534 = vrot.lane.b32.xlu0 %v329, 72
    %v535 = vpop.permute.xlu0 %534
    %v537 = vsel %vm333, %v533, 0
    %v540 = vsel %vm333, %v535, 0
    %542 = vmatpush.bf16.xpose.msra.mxu0 0
    %543 = vmatpush.bf16.xpose.msra.mxu0 0
    %544 = vmatpush.bf16.xpose.msra.mxu0 0
    %545 = vmatpush.bf16.xpose.msra.mxu0 0
    %546 = vmatpush.bf16.xpose.msra.mxu0 0
    %547 = vmatpush.bf16.xpose.msra.mxu0 0
    %548 = vmatpush.bf16.xpose.msra.mxu0 0
    %549 = vmatpush.bf16.xpose.msra.mxu0 %v540
    %550 = vmatmul.bf16.gmra.mxu0 %v537
    %v551 = vpop.f32.mrf.mxu0
    %v552 = vadd.f32 %v221, %v551
    %v553 = vpop.f32.mrf.mxu0
    %v554 = vadd.f32 %v222, %v553
    %555 = vdwg.mxu0
    %v556 = vsel %vm354, %v552, -inf
    %557 = vmax.xlane.f32.xlu0 %v556
    %v558 = vpop.xlane.xlu0 %557
    %v559 = vsel %vm354, %v554, -inf
    %560 = vmax.xlane.f32.xlu0 %v559
    %v561 = vpop.xlane.xlu0 %560
    %v562 = vsub.f32 %v552, %v558
    %v563 = vsub.f32 %v554, %v561
    %v564 = vmul.f32 %v562, 1.442695
    %v565 = vpow.pop %v564
    %v566 = vmul.f32 %v563, 1.442695
    %v567 = vpow.pop %v566
    %v568 = vsel %vm354, %v565, 0.0
    %569 = vadd.xlane.f32.xlu0 %v568
    %v570 = vpop.xlane.xlu0 %569
    %v571 = vsel %vm354, %v567, 0.0
    %572 = vadd.xlane.f32.xlu0 %v571
    %v573 = vpop.xlane.xlu0 %572
    %v574 = vrcp.pop %v570
    %v575 = vrcp.pop %v573
    %v576 = vmul.f32 %v565, %v574
    %v577 = vmul.f32 %v567, %v575
    %v578 = vpack.c.bf16 %v577, %v576
    %579 = vrot.lane.b32.xlu0 %v329, 40
    %v580 = vpop.permute.xlu0 %579
    %v583 = vsel %vm354, %v578, 0
    %585 = vmatpush.bf16.msra.mxu0 0
    %586 = vmatpush.bf16.msra.mxu0 0
    %587 = vmatpush.bf16.msra.mxu0 0
    %588 = vmatpush.bf16.msra.mxu0 0
    %589 = vmatpush.bf16.msra.mxu0 0
    %590 = vmatpush.bf16.msra.mxu0 0
    %591 = vmatpush.bf16.msra.mxu0 0
    %592 = vmatpush.bf16.msra.mxu0 %v580
    %593 = vmatmul.bf16.gmra.mxu0 %v583
    %v594 = vpop.f32.mrf.mxu0
    %v595 = vadd.f32 0.0, %v594
    %v596 = vpop.f32.mrf.mxu0
    %v597 = vadd.f32 0.0, %v596
    %598 = vdwg.mxu0
    %601 = vrot.lane.b32.xlu0 %v461, 8
    %v602 = vpop.permute.xlu0 %601
    %603 = vrot.lane.b32.xlu0 %v463, 8
    %v604 = vpop.permute.xlu0 %603
    %609 = vrot.lane.b32.xlu0 %v528, 16
    %v610 = vpop.permute.xlu0 %609
    %611 = vrot.lane.b32.xlu0 %v530, 16
    %v612 = vpop.permute.xlu0 %611
    %617 = vrot.lane.b32.xlu0 %v595, 24
    %v618 = vpop.permute.xlu0 %617
    %619 = vrot.lane.b32.xlu0 %v597, 24
    %v620 = vpop.permute.xlu0 %619
    %v623 = vsel %vm333, %v394, %v602
    %v624 = vsel %vm333, %v396, %v604
    %v625 = vsel %vm354, %v623, %v610
    %v626 = vsel %vm354, %v624, %v612
    %vm627 = vcmask 195584
    %v628 = vsel %vm627, %v625, %v618
    %v629 = vsel %vm627, %v626, %v620
    %v630 = vpack.c.bf16 %v629, %v628
    %v631 = vld [vmem:[%s12] sm:$0xf]
    %v632 = vld [vmem:[%s12 + $0x4] sm:$0xf]
    %v633 = vld [vmem:[%s12 + $0x8] sm:$0xf]
    %v634 = vld [vmem:[%s12 + $0xc] sm:$0xf]
    %v635 = vld [vmem:[#allocation11] sm:$0x1]
    %v637 = vperm.slane %v635, 0
    %v643 = vunpack.c.l.b16 %v631
    %v644 = vunpack.c.l.b16 %v632
    %v645 = vunpack.c.l.b16 %v633
    %v646 = vunpack.c.l.b16 %v634
    %v647 = vpack.c.b16 %v644, %v643
    %v648 = vpack.c.b16 %v646, %v645
    %v652 = vsel %vm229, %v630, 0
    %654 = vmatpush.bf16.msra.mxu0 0
    %655 = vmatpush.bf16.msra.mxu0 0
    %656 = vmatpush.bf16.msra.mxu0 0
    %657 = vmatpush.bf16.msra.mxu0 0
    %658 = vmatpush.bf16.msra.mxu0 0
    %659 = vmatpush.bf16.msra.mxu0 0
    %660 = vmatpush.bf16.msra.mxu0 %v648
    %661 = vmatpush.bf16.msra.mxu0 %v647
    %662 = vmatmul.bf16.gmra.mxu0 %v652
    %v663 = vpop.f32.mrf.mxu0
    %v664 = vadd.f32 %v637, %v663
    %v665 = vpop.f32.mrf.mxu0
    %v666 = vadd.f32 %v637, %v665
    %667 = vdwg.mxu0
    %v668 = vadd.f32 %v219, %v664
    %v669 = vadd.f32 %v220, %v666
    %v670 = vld [vmem:[#allocation13] sm:$0x1]
    %v671 = vld [vmem:[#allocation14] sm:$0x1]
    %v672 = vsel %vm229, %v668, 0.0
    %673 = vadd.xlane.f32.xlu0 %v672
    %v674 = vpop.xlane.xlu0 %673
    %v675 = vsel %vm229, %v669, 0.0
    %676 = vadd.xlane.f32.xlu0 %v675
    %v677 = vpop.xlane.xlu0 %676
    %v678 = vmul.f32 %v674, %v242
    %v679 = vmul.f32 %v677, %v242
    %v680 = vsub.f32 %v668, %v678
    %v681 = vsub.f32 %v669, %v679
    %v682 = vmul.f32 %v680, %v680
    %v683 = vmul.f32 %v681, %v681
    %v684 = vsel %vm229, %v682, 0.0
    %685 = vadd.xlane.f32.xlu0 %v684
    %v686 = vpop.xlane.xlu0 %685
    %v687 = vsel %vm229, %v683, 0.0
    %688 = vadd.xlane.f32.xlu0 %v687
    %v689 = vpop.xlane.xlu0 %688
    %v690 = vmul.f32 %v686, %v242
    %v691 = vmul.f32 %v689, %v242
    %v692 = vadd.f32 %v690, 1e-05
    %v693 = vadd.f32 %v691, 1e-05
    %v694 = vrsqrt.pop %v692
    %v695 = vmul.f32 %v694, %v692
    %v696 = vmul.f32 %v695, %v694
    %v697 = vmul.f32 0.5, %v696
    %v698 = vsub.f32 1.5, %v697
    %v699 = vmul.f32 %v694, %v698
    %vm700 = vweird.f32 %v692
    %vm701 = vweird.f32 %v694
    %vm702 = vmor %vm700, %vm701
    %v703 = vsel %vm702, %v694, %v699
    %v704 = vrsqrt.pop %v693
    %v705 = vmul.f32 %v704, %v693
    %v706 = vmul.f32 %v705, %v704
    %v707 = vmul.f32 0.5, %v706
    %v708 = vsub.f32 1.5, %v707
    %v709 = vmul.f32 %v704, %v708
    %vm710 = vweird.f32 %v693
    %vm711 = vweird.f32 %v704
    %vm712 = vmor %vm710, %vm711
    %v713 = vsel %vm712, %v704, %v709
    %v714 = vmul.f32 %v680, %v703
    %v715 = vmul.f32 %v681, %v713
    %v717 = vperm.slane %v670, 0
    %v719 = vmul.f32 %v714, %v717
    %v720 = vmul.f32 %v715, %v717
    %v722 = vperm.slane %v671, 0
    %v724 = vadd.f32 %v719, %v722
    %v725 = vadd.f32 %v720, %v722
    %v726 = vpack.c.bf16 %v725, %v724
    %v727 = vld [vmem:[%s16] sm:$0xf]
    %v728 = vld [vmem:[%s16 + $0x4] sm:$0xf]
    %v729 = vld [vmem:[%s16 + $0x8] sm:$0xf]
    %v730 = vld [vmem:[%s16 + $0xc] sm:$0xf]
    %v731 = vld [vmem:[#allocation16] sm:$0x1]
    %v733 = vperm.slane %v731, 0
    %v739 = vunpack.c.l.b16 %v727
    %v740 = vunpack.c.l.b16 %v728
    %v741 = vunpack.c.l.b16 %v729
    %v742 = vunpack.c.l.b16 %v730
    %v743 = vpack.c.b16 %v740, %v739
    %v744 = vpack.c.b16 %v742, %v741
    %v748 = vsel %vm229, %v726, 0
    %750 = vmatpush.bf16.msra.mxu0 0
    %751 = vmatpush.bf16.msra.mxu0 0
    %752 = vmatpush.bf16.msra.mxu0 0
    %753 = vmatpush.bf16.msra.mxu0 0
    %754 = vmatpush.bf16.msra.mxu0 0
    %755 = vmatpush.bf16.msra.mxu0 0
    %756 = vmatpush.bf16.msra.mxu0 %v744
    %757 = vmatpush.bf16.msra.mxu0 %v743
    %758 = vmatmul.bf16.gmra.mxu0 %v748
    %v759 = vpop.f32.mrf.mxu0
    %v760 = vadd.f32 %v733, %v759
    %v761 = vpop.f32.mrf.mxu0
    %v762 = vadd.f32 %v733, %v761
    %763 = vdwg.mxu0
    %v764 = vmul.f32 %v760, 1.702
    %v765 = vmul.f32 %v762, 1.702
    %v766 = vxor.u32 %v764, 2147483648
    %v767 = vxor.u32 %v765, 2147483648
    %v768 = vmul.f32 %v766, 1.442695
    %v769 = vpow.pop %v768
    %v770 = vmul.f32 %v767, 1.442695
    %v771 = vpow.pop %v770
    %v772 = vadd.f32 %v769, 1.0
    %v773 = vadd.f32 %v771, 1.0
    %v774 = vrcp.pop %v772
    %v775 = vmul.f32 %v772, %v774
    %v776 = vsub.f32 1.0, %v775
    %v777 = vmul.f32 %v774, %v776
    %v778 = vadd.f32 %v774, %v777
    %vm779 = vweird.f32 %v772
    %vm780 = vweird.f32 %v774
    %vm781 = vmor %vm779, %vm780
    %v782 = vsel %vm781, %v774, %v778
    %v783 = vand.u32 2147483647, %v772
    %vm784 = vcmp.eq.f32.partialorder %v783, 8.507059e+37
    %v785 = vand.u32 %v772, 2147483648
    %v786 = vor.u32 1.1754944e-38, %v785
    %v787 = vsel %vm784, %v786, %v782
    %v788 = vmul.f32 1.0, %v787
    %v789 = vrcp.pop %v773
    %v790 = vmul.f32 %v773, %v789
    %v791 = vsub.f32 1.0, %v790
    %v792 = vmul.f32 %v789, %v791
    %v793 = vadd.f32 %v789, %v792
    %vm794 = vweird.f32 %v773
    %vm795 = vweird.f32 %v789
    %vm796 = vmor %vm794, %vm795
    %v797 = vsel %vm796, %v789, %v793
    %v798 = vand.u32 2147483647, %v773
    %vm799 = vcmp.eq.f32.partialorder %v798, 8.507059e+37
    %v800 = vand.u32 %v773, 2147483648
    %v801 = vor.u32 1.1754944e-38, %v800
    %v802 = vsel %vm799, %v801, %v797
    %v803 = vmul.f32 1.0, %v802
    %v804 = vmul.f32 %v760, %v788
    %v805 = vmul.f32 %v762, %v803
    %v806 = vpack.c.bf16 %v805, %v804
    %v807 = vld [vmem:[%s18] sm:$0xf]
    %v808 = vld [vmem:[%s18 + $0x4] sm:$0xf]
    %v809 = vld [vmem:[%s18 + $0x8] sm:$0xf]
    %v810 = vld [vmem:[%s18 + $0xc] sm:$0xf]
    %v811 = vld [vmem:[%s18 + $0x10] sm:$0xf]
    %v812 = vld [vmem:[%s18 + $0x14] sm:$0xf]
    %v813 = vld [vmem:[%s18 + $0x18] sm:$0xf]
    %v814 = vld [vmem:[%s18 + $0x1c] sm:$0xf]
    %v815 = vld [vmem:[%s18 + $0x20] sm:$0xf]
    %v816 = vld [vmem:[%s18 + $0x24] sm:$0xf]
    %v817 = vld [vmem:[%s18 + $0x28] sm:$0xf]
    %v818 = vld [vmem:[%s18 + $0x2c] sm:$0xf]
    %v819 = vld [vmem:[%s18 + $0x30] sm:$0xf]
    %v820 = vld [vmem:[%s18 + $0x34] sm:$0xf]
    %v821 = vld [vmem:[%s18 + $0x38] sm:$0xf]
    %v822 = vld [vmem:[%s18 + $0x3c] sm:$0xf]
    %v839 = vunpack.c.l.b16 %v807
    %v840 = vunpack.c.l.b16 %v808
    %v841 = vunpack.c.l.b16 %v809
    %v842 = vunpack.c.l.b16 %v810
    %v843 = vunpack.c.l.b16 %v811
    %v844 = vunpack.c.l.b16 %v812
    %v845 = vunpack.c.l.b16 %v813
    %v846 = vunpack.c.l.b16 %v814
    %v847 = vunpack.c.l.b16 %v815
    %v848 = vunpack.c.l.b16 %v816
    %v849 = vunpack.c.l.b16 %v817
    %v850 = vunpack.c.l.b16 %v818
    %v851 = vunpack.c.l.b16 %v819
    %v852 = vunpack.c.l.b16 %v820
    %v853 = vunpack.c.l.b16 %v821
    %v854 = vunpack.c.l.b16 %v822
    %v855 = vpack.c.b16 %v840, %v839
    %v856 = vpack.c.b16 %v842, %v841
    %v857 = vpack.c.b16 %v844, %v843
    %v858 = vpack.c.b16 %v846, %v845
    %v859 = vpack.c.b16 %v848, %v847
    %v860 = vpack.c.b16 %v850, %v849
    %v861 = vpack.c.b16 %v852, %v851
    %v862 = vpack.c.b16 %v854, %v853
    %871 = vmatpush.bf16.msra.mxu0 %v862
    %872 = vmatpush.bf16.msra.mxu0 %v861
    %873 = vmatpush.bf16.msra.mxu0 %v860
    %874 = vmatpush.bf16.msra.mxu0 %v859
    %875 = vmatpush.bf16.msra.mxu0 %v858
    %876 = vmatpush.bf16.msra.mxu0 %v857
    %877 = vmatpush.bf16.msra.mxu0 %v856
    %878 = vmatpush.bf16.msra.mxu0 %v855
    %879 = vmatmul.bf16.gmra.mxu0 %v806
    %v880 = vpop.f32.mrf.mxu0
    %v881 = vadd.f32 0.0, %v880
    %v882 = vpop.f32.mrf.mxu0
    %v883 = vadd.f32 0.0, %v882
    %884 = vdwg.mxu0
    %v885 = vadd.f32 %v668, %v881
    %v886 = vadd.f32 %v669, %v883
    %v887 = vld [vmem:[#allocation17] sm:$0x1]
    %v889 = vperm.slane %v887, 0
    %v891 = vadd.f32 %v885, %v889
    %v892 = vadd.f32 %v886, %v889
    %v893 = vld [vmem:[%s1] sm:$0xff]
    %v894 = vld [vmem:[%s1 + $0x8] sm:$0xff]
    %v895 = vsel %vm225, 1, 0
    %v896 = vsel %vm226, 1, 0
    %897 = vset.pattern.permute.xlu0 0
    %898 = vperm.xlu0 %897, %v895
    %v899 = vpop.permute.xlu0 %898
    %900 = vset.pattern.permute.xlu0 0
    %901 = vperm.xlu0 %900, %v896
    %v902 = vpop.permute.xlu0 %901
    %vm903 = vcmp.eq.s32.totalorder %v899, 1
    %vm904 = vcmp.eq.s32.totalorder %v902, 1
    %v905 = vsel %vm903, %v893, %v891
    %v906 = vsel %vm904, %v894, %v892
    %s907 = scalar_lea.vmem [#allocation7], 1
    %v908 = vld [vmem:[%s907] sm:$0x1]
    %s909 = scalar_lea.vmem [#allocation8], 1
    %v910 = vld [vmem:[%s909] sm:$0x1]
    %v911 = vsel %vm229, %v905, 0.0
    %912 = vadd.xlane.f32.xlu0 %v911
    %v913 = vpop.xlane.xlu0 %912
    %v914 = vsel %vm229, %v906, 0.0
    %915 = vadd.xlane.f32.xlu0 %v914
    %v916 = vpop.xlane.xlu0 %915
    %v917 = vmul.f32 %v913, %v242
    %v918 = vmul.f32 %v916, %v242
    %v919 = vsub.f32 %v905, %v917
    %v920 = vsub.f32 %v906, %v918
    %v921 = vmul.f32 %v919, %v919
    %v922 = vmul.f32 %v920, %v920
    %v923 = vsel %vm229, %v921, 0.0
    %924 = vadd.xlane.f32.xlu0 %v923
    %v925 = vpop.xlane.xlu0 %924
    %v926 = vsel %vm229, %v922, 0.0
    %927 = vadd.xlane.f32.xlu0 %v926
    %v928 = vpop.xlane.xlu0 %927
    %v929 = vmul.f32 %v925, %v242
    %v930 = vmul.f32 %v928, %v242
    %v931 = vadd.f32 %v929, 1e-05
    %v932 = vadd.f32 %v930, 1e-05
    %v933 = vrsqrt.pop %v931
    %v934 = vmul.f32 %v933, %v931
    %v935 = vmul.f32 %v934, %v933
    %v936 = vmul.f32 0.5, %v935
    %v937 = vsub.f32 1.5, %v936
    %v938 = vmul.f32 %v933, %v937
    %vm939 = vweird.f32 %v931
    %vm940 = vweird.f32 %v933
    %vm941 = vmor %vm939, %vm940
    %v942 = vsel %vm941, %v933, %v938
    %v943 = vrsqrt.pop %v932
    %v944 = vmul.f32 %v943, %v932
    %v945 = vmul.f32 %v944, %v943
    %v946 = vmul.f32 0.5, %v945
    %v947 = vsub.f32 1.5, %v946
    %v948 = vmul.f32 %v943, %v947
    %vm949 = vweird.f32 %v932
    %vm950 = vweird.f32 %v943
    %vm951 = vmor %vm949, %vm950
    %v952 = vsel %vm951, %v943, %v948
    %v953 = vmul.f32 %v919, %v942
    %v954 = vmul.f32 %v920, %v952
    %v956 = vperm.slane %v908, 0
    %v958 = vmul.f32 %v953, %v956
    %v959 = vmul.f32 %v954, %v956
    %v961 = vperm.slane %v910, 0
    %v963 = vadd.f32 %v958, %v961
    %v964 = vadd.f32 %v959, %v961
    %v965 = vpack.c.bf16 %v964, %v963
    %s966 = scalar_lea.vmem %s10, 16
    %v967 = vld [vmem:[%s966] sm:$0xf]
    %v968 = vld [vmem:[%s966 + $0x4] sm:$0xf]
    %v969 = vld [vmem:[%s966 + $0x8] sm:$0xf]
    %v970 = vld [vmem:[%s966 + $0xc] sm:$0xf]
    %s971 = scalar_lea.vmem [#allocation10], 1
    %v972 = vld [vmem:[%s971] sm:$0x1]
    %v974 = vperm.slane %v972, 0
    %v980 = vunpack.c.l.b16 %v967
    %v981 = vunpack.c.l.b16 %v968
    %v982 = vunpack.c.l.b16 %v969
    %v983 = vunpack.c.l.b16 %v970
    %v984 = vpack.c.b16 %v981, %v980
    %v985 = vpack.c.b16 %v983, %v982
    %v989 = vsel %vm229, %v965, 0
    %991 = vmatpush.bf16.msra.mxu0 0
    %992 = vmatpush.bf16.msra.mxu0 0
    %993 = vmatpush.bf16.msra.mxu0 0
    %994 = vmatpush.bf16.msra.mxu0 0
    %995 = vmatpush.bf16.msra.mxu0 0
    %996 = vmatpush.bf16.msra.mxu0 0
    %997 = vmatpush.bf16.msra.mxu0 %v985
    %998 = vmatpush.bf16.msra.mxu0 %v984
    %999 = vmatmul.bf16.gmra.mxu0 %v989
    %v1000 = vpop.f32.mrf.mxu0
    %v1001 = vadd.f32 %v974, %v1000
    %v1002 = vpop.f32.mrf.mxu0
    %v1003 = vadd.f32 %v974, %v1002
    %1004 = vdwg.mxu0
    %v1005 = vpack.c.bf16 %v1003, %v1001
    %1007 = vrot.lane.b32.xlu0 %v1005, 96
    %v1008 = vpop.permute.xlu0 %1007
    %v1010 = vsel %vm333, %v1005, 0
    %v1013 = vsel %vm333, %v1008, 0
    %1015 = vmatpush.bf16.xpose.msra.mxu0 0
    %1016 = vmatpush.bf16.xpose.msra.mxu0 0
    %1017 = vmatpush.bf16.xpose.msra.mxu0 0
    %1018 = vmatpush.bf16.xpose.msra.mxu0 0
    %1019 = vmatpush.bf16.xpose.msra.mxu0 0
    %1020 = vmatpush.bf16.xpose.msra.mxu0 0
    %1021 = vmatpush.bf16.xpose.msra.mxu0 0
    %1022 = vmatpush.bf16.xpose.msra.mxu0 %v1013
    %1023 = vmatmul.bf16.gmra.mxu0 %v1010
    %v1024 = vpop.f32.mrf.mxu0
    %v1025 = vadd.f32 %v221, %v1024
    %v1026 = vpop.f32.mrf.mxu0
    %v1027 = vadd.f32 %v222, %v1026
    %1028 = vdwg.mxu0
    %v1029 = vsel %vm354, %v1025, -inf
    %1030 = vmax.xlane.f32.xlu0 %v1029
    %v1031 = vpop.xlane.xlu0 %1030
    %v1032 = vsel %vm354, %v1027, -inf
    %1033 = vmax.xlane.f32.xlu0 %v1032
    %v1034 = vpop.xlane.xlu0 %1033
    %v1035 = vsub.f32 %v1025, %v1031
    %v1036 = vsub.f32 %v1027, %v1034
    %v1037 = vmul.f32 %v1035, 1.442695
    %v1038 = vpow.pop %v1037
    %v1039 = vmul.f32 %v1036, 1.442695
    %v1040 = vpow.pop %v1039
    %v1041 = vsel %vm354, %v1038, 0.0
    %1042 = vadd.xlane.f32.xlu0 %v1041
    %v1043 = vpop.xlane.xlu0 %1042
    %v1044 = vsel %vm354, %v1040, 0.0
    %1045 = vadd.xlane.f32.xlu0 %v1044
    %v1046 = vpop.xlane.xlu0 %1045
    %v1047 = vrcp.pop %v1043
    %v1048 = vrcp.pop %v1046
    %v1049 = vmul.f32 %v1038, %v1047
    %v1050 = vmul.f32 %v1040, %v1048
    %v1051 = vpack.c.bf16 %v1050, %v1049
    %1052 = vrot.lane.b32.xlu0 %v1005, 64
    %v1053 = vpop.permute.xlu0 %1052
    %v1056 = vsel %vm354, %v1051, 0
    %1058 = vmatpush.bf16.msra.mxu0 0
    %1059 = vmatpush.bf16.msra.mxu0 0
    %1060 = vmatpush.bf16.msra.mxu0 0
    %1061 = vmatpush.bf16.msra.mxu0 0
    %1062 = vmatpush.bf16.msra.mxu0 0
    %1063 = vmatpush.bf16.msra.mxu0 0
    %1064 = vmatpush.bf16.msra.mxu0 0
    %1065 = vmatpush.bf16.msra.mxu0 %v1053
    %1066 = vmatmul.bf16.gmra.mxu0 %v1056
    %v1067 = vpop.f32.mrf.mxu0
    %v1068 = vadd.f32 0.0, %v1067
    %v1069 = vpop.f32.mrf.mxu0
    %v1070 = vadd.f32 0.0, %v1069
    %1071 = vdwg.mxu0
    %1072 = vrot.lane.b32.xlu0 %v1005, 120
    %v1073 = vpop.permute.xlu0 %1072
    %1074 = vrot.lane.b32.xlu0 %v1005, 88
    %v1075 = vpop.permute.xlu0 %1074
    %v1077 = vsel %vm333, %v1073, 0
    %v1080 = vsel %vm333, %v1075, 0
    %1082 = vmatpush.bf16.xpose.msra.mxu0 0
    %1083 = vmatpush.bf16.xpose.msra.mxu0 0
    %1084 = vmatpush.bf16.xpose.msra.mxu0 0
    %1085 = vmatpush.bf16.xpose.msra.mxu0 0
    %1086 = vmatpush.bf16.xpose.msra.mxu0 0
    %1087 = vmatpush.bf16.xpose.msra.mxu0 0
    %1088 = vmatpush.bf16.xpose.msra.mxu0 0
    %1089 = vmatpush.bf16.xpose.msra.mxu0 %v1080
    %1090 = vmatmul.bf16.gmra.mxu0 %v1077
    %v1091 = vpop.f32.mrf.mxu0
    %v1092 = vadd.f32 %v221, %v1091
    %v1093 = vpop.f32.mrf.mxu0
    %v1094 = vadd.f32 %v222, %v1093
    %1095 = vdwg.mxu0
    %v1096 = vsel %vm354, %v1092, -inf
    %1097 = vmax.xlane.f32.xlu0 %v1096
    %v1098 = vpop.xlane.xlu0 %1097
    %v1099 = vsel %vm354, %v1094, -inf
    %1100 = vmax.xlane.f32.xlu0 %v1099
    %v1101 = vpop.xlane.xlu0 %1100
    %v1102 = vsub.f32 %v1092, %v1098
    %v1103 = vsub.f32 %v1094, %v1101
    %v1104 = vmul.f32 %v1102, 1.442695
    %v1105 = vpow.pop %v1104
    %v1106 = vmul.f32 %v1103, 1.442695
    %v1107 = vpow.pop %v1106
    %v1108 = vsel %vm354, %v1105, 0.0
    %1109 = vadd.xlane.f32.xlu0 %v1108
    %v1110 = vpop.xlane.xlu0 %1109
    %v1111 = vsel %vm354, %v1107, 0.0
    %1112 = vadd.xlane.f32.xlu0 %v1111
    %v1113 = vpop.xlane.xlu0 %1112
    %v1114 = vrcp.pop %v1110
    %v1115 = vrcp.pop %v1113
    %v1116 = vmul.f32 %v1105, %v1114
    %v1117 = vmul.f32 %v1107, %v1115
    %v1118 = vpack.c.bf16 %v1117, %v1116
    %1119 = vrot.lane.b32.xlu0 %v1005, 56
    %v1120 = vpop.permute.xlu0 %1119
    %v1123 = vsel %vm354, %v1118, 0
    %1125 = vmatpush.bf16.msra.mxu0 0
    %1126 = vmatpush.bf16.msra.mxu0 0
    %1127 = vmatpush.bf16.msra.mxu0 0
    %1128 = vmatpush.bf16.msra.mxu0 0
    %1129 = vmatpush.bf16.msra.mxu0 0
    %1130 = vmatpush.bf16.msra.mxu0 0
    %1131 = vmatpush.bf16.msra.mxu0 0
    %1132 = vmatpush.bf16.msra.mxu0 %v1120
    %1133 = vmatmul.bf16.gmra.mxu0 %v1123
    %v1134 = vpop.f32.mrf.mxu0
    %v1135 = vadd.f32 0.0, %v1134
    %v1136 = vpop.f32.mrf.mxu0
    %v1137 = vadd.f32 0.0, %v1136
    %1138 = vdwg.mxu0
    %1139 = vrot.lane.b32.xlu0 %v1005, 112
    %v1140 = vpop.permute.xlu0 %1139
    %1141 = vrot.lane.b32.xlu0 %v1005, 80
    %v1142 = vpop.permute.xlu0 %1141
    %v1144 = vsel %vm333, %v1140, 0
    %v1147 = vsel %vm333, %v1142, 0
    %1149 = vmatpush.bf16.xpose.msra.mxu0 0
    %1150 = vmatpush.bf16.xpose.msra.mxu0 0
    %1151 = vmatpush.bf16.xpose.msra.mxu0 0
    %1152 = vmatpush.bf16.xpose.msra.mxu0 0
    %1153 = vmatpush.bf16.xpose.msra.mxu0 0
    %1154 = vmatpush.bf16.xpose.msra.mxu0 0
    %1155 = vmatpush.bf16.xpose.msra.mxu0 0
    %1156 = vmatpush.bf16.xpose.msra.mxu0 %v1147
    %1157 = vmatmul.bf16.gmra.mxu0 %v1144
    %v1158 = vpop.f32.mrf.mxu0
    %v1159 = vadd.f32 %v221, %v1158
    %v1160 = vpop.f32.mrf.mxu0
    %v1161 = vadd.f32 %v222, %v1160
    %1162 = vdwg.mxu0
    %v1163 = vsel %vm354, %v1159, -inf
    %1164 = vmax.xlane.f32.xlu0 %v1163
    %v1165 = vpop.xlane.xlu0 %1164
    %v1166 = vsel %vm354, %v1161, -inf
    %1167 = vmax.xlane.f32.xlu0 %v1166
    %v1168 = vpop.xlane.xlu0 %1167
    %v1169 = vsub.f32 %v1159, %v1165
    %v1170 = vsub.f32 %v1161, %v1168
    %v1171 = vmul.f32 %v1169, 1.442695
    %v1172 = vpow.pop %v1171
    %v1173 = vmul.f32 %v1170, 1.442695
    %v1174 = vpow.pop %v1173
    %v1175 = vsel %vm354, %v1172, 0.0
    %1176 = vadd.xlane.f32.xlu0 %v1175
    %v1177 = vpop.xlane.xlu0 %1176
    %v1178 = vsel %vm354, %v1174, 0.0
    %1179 = vadd.xlane.f32.xlu0 %v1178
    %v1180 = vpop.xlane.xlu0 %1179
    %v1181 = vrcp.pop %v1177
    %v1182 = vrcp.pop %v1180
    %v1183 = vmul.f32 %v1172, %v1181
    %v1184 = vmul.f32 %v1174, %v1182
    %v1185 = vpack.c.bf16 %v1184, %v1183
    %1186 = vrot.lane.b32.xlu0 %v1005, 48
    %v1187 = vpop.permute.xlu0 %1186
    %v1190 = vsel %vm354, %v1185, 0
    %1192 = vmatpush.bf16.msra.mxu0 0
    %1193 = vmatpush.bf16.msra.mxu0 0
    %1194 = vmatpush.bf16.msra.mxu0 0
    %1195 = vmatpush.bf16.msra.mxu0 0
    %1196 = vmatpush.bf16.msra.mxu0 0
    %1197 = vmatpush.bf16.msra.mxu0 0
    %1198 = vmatpush.bf16.msra.mxu0 0
    %1199 = vmatpush.bf16.msra.mxu0 %v1187
    %1200 = vmatmul.bf16.gmra.mxu0 %v1190
    %v1201 = vpop.f32.mrf.mxu0
    %v1202 = vadd.f32 0.0, %v1201
    %v1203 = vpop.f32.mrf.mxu0
    %v1204 = vadd.f32 0.0, %v1203
    %1205 = vdwg.mxu0
    %1206 = vrot.lane.b32.xlu0 %v1005, 104
    %v1207 = vpop.permute.xlu0 %1206
    %1208 = vrot.lane.b32.xlu0 %v1005, 72
    %v1209 = vpop.permute.xlu0 %1208
    %v1211 = vsel %vm333, %v1207, 0
    %v1214 = vsel %vm333, %v1209, 0
    %1216 = vmatpush.bf16.xpose.msra.mxu0 0
    %1217 = vmatpush.bf16.xpose.msra.mxu0 0
    %1218 = vmatpush.bf16.xpose.msra.mxu0 0
    %1219 = vmatpush.bf16.xpose.msra.mxu0 0
    %1220 = vmatpush.bf16.xpose.msra.mxu0 0
    %1221 = vmatpush.bf16.xpose.msra.mxu0 0
    %1222 = vmatpush.bf16.xpose.msra.mxu0 0
    %1223 = vmatpush.bf16.xpose.msra.mxu0 %v1214
    %1224 = vmatmul.bf16.gmra.mxu0 %v1211
    %v1225 = vpop.f32.mrf.mxu0
    %v1226 = vadd.f32 %v221, %v1225
    %v1227 = vpop.f32.mrf.mxu0
    %v1228 = vadd.f32 %v222, %v1227
    %1229 = vdwg.mxu0
    %v1230 = vsel %vm354, %v1226, -inf
    %1231 = vmax.xlane.f32.xlu0 %v1230
    %v1232 = vpop.xlane.xlu0 %1231
    %v1233 = vsel %vm354, %v1228, -inf
    %1234 = vmax.xlane.f32.xlu0 %v1233
    %v1235 = vpop.xlane.xlu0 %1234
    %v1236 = vsub.f32 %v1226, %v1232
    %v1237 = vsub.f32 %v1228, %v1235
    %v1238 = vmul.f32 %v1236, 1.442695
    %v1239 = vpow.pop %v1238
    %v1240 = vmul.f32 %v1237, 1.442695
    %v1241 = vpow.pop %v1240
    %v1242 = vsel %vm354, %v1239, 0.0
    %1243 = vadd.xlane.f32.xlu0 %v1242
    %v1244 = vpop.xlane.xlu0 %1243
    %v1245 = vsel %vm354, %v1241, 0.0
    %1246 = vadd.xlane.f32.xlu0 %v1245
    %v1247 = vpop.xlane.xlu0 %1246
    %v1248 = vrcp.pop %v1244
    %v1249 = vrcp.pop %v1247
    %v1250 = vmul.f32 %v1239, %v1248
    %v1251 = vmul.f32 %v1241, %v1249
    %v1252 = vpack.c.bf16 %v1251, %v1250
    %1253 = vrot.lane.b32.xlu0 %v1005, 40
    %v1254 = vpop.permute.xlu0 %1253
    %v1257 = vsel %vm354, %v1252, 0
    %1259 = vmatpush.bf16.msra.mxu0 0
    %1260 = vmatpush.bf16.msra.mxu0 0
    %1261 = vmatpush.bf16.msra.mxu0 0
    %1262 = vmatpush.bf16.msra.mxu0 0
    %1263 = vmatpush.bf16.msra.mxu0 0
    %1264 = vmatpush.bf16.msra.mxu0 0
    %1265 = vmatpush.bf16.msra.mxu0 0
    %1266 = vmatpush.bf16.msra.mxu0 %v1254
    %1267 = vmatmul.bf16.gmra.mxu0 %v1257
    %v1268 = vpop.f32.mrf.mxu0
    %v1269 = vadd.f32 0.0, %v1268
    %v1270 = vpop.f32.mrf.mxu0
    %v1271 = vadd.f32 0.0, %v1270
    %1272 = vdwg.mxu0
    %1275 = vrot.lane.b32.xlu0 %v1135, 8
    %v1276 = vpop.permute.xlu0 %1275
    %1277 = vrot.lane.b32.xlu0 %v1137, 8
    %v1278 = vpop.permute.xlu0 %1277
    %1283 = vrot.lane.b32.xlu0 %v1202, 16
    %v1284 = vpop.permute.xlu0 %1283
    %1285 = vrot.lane.b32.xlu0 %v1204, 16
    %v1286 = vpop.permute.xlu0 %1285
    %1291 = vrot.lane.b32.xlu0 %v1269, 24
    %v1292 = vpop.permute.xlu0 %1291
    %1293 = vrot.lane.b32.xlu0 %v1271, 24
    %v1294 = vpop.permute.xlu0 %1293
    %v1297 = vsel %vm333, %v1068, %v1276
    %v1298 = vsel %vm333, %v1070, %v1278
    %v1299 = vsel %vm354, %v1297, %v1284
    %v1300 = vsel %vm354, %v1298, %v1286
    %v1301 = vsel %vm627, %v1299, %v1292
    %v1302 = vsel %vm627, %v1300, %v1294
    %v1303 = vpack.c.bf16 %v1302, %v1301
    %s1304 = scalar_lea.vmem %s12, 16
    %v1305 = vld [vmem:[%s1304] sm:$0xf]
    %v1306 = vld [vmem:[%s1304 + $0x4] sm:$0xf]
    %v1307 = vld [vmem:[%s1304 + $0x8] sm:$0xf]
    %v1308 = vld [vmem:[%s1304 + $0xc] sm:$0xf]
    %s1309 = scalar_lea.vmem [#allocation11], 1
    %v1310 = vld [vmem:[%s1309] sm:$0x1]
    %v1312 = vperm.slane %v1310, 0
    %v1318 = vunpack.c.l.b16 %v1305
    %v1319 = vunpack.c.l.b16 %v1306
    %v1320 = vunpack.c.l.b16 %v1307
    %v1321 = vunpack.c.l.b16 %v1308
    %v1322 = vpack.c.b16 %v1319, %v1318
    %v1323 = vpack.c.b16 %v1321, %v1320
    %v1327 = vsel %vm229, %v1303, 0
    %1329 = vmatpush.bf16.msra.mxu0 0
    %1330 = vmatpush.bf16.msra.mxu0 0
    %1331 = vmatpush.bf16.msra.mxu0 0
    %1332 = vmatpush.bf16.msra.mxu0 0
    %1333 = vmatpush.bf16.msra.mxu0 0
    %1334 = vmatpush.bf16.msra.mxu0 0
    %1335 = vmatpush.bf16.msra.mxu0 %v1323
    %1336 = vmatpush.bf16.msra.mxu0 %v1322
    %1337 = vmatmul.bf16.gmra.mxu0 %v1327
    %v1338 = vpop.f32.mrf.mxu0
    %v1339 = vadd.f32 %v1312, %v1338
    %v1340 = vpop.f32.mrf.mxu0
    %v1341 = vadd.f32 %v1312, %v1340
    %1342 = vdwg.mxu0
    %v1343 = vadd.f32 %v905, %v1339
    %v1344 = vadd.f32 %v906, %v1341
    %s1345 = scalar_lea.vmem [#allocation13], 1
    %v1346 = vld [vmem:[%s1345] sm:$0x1]
    %s1347 = scalar_lea.vmem [#allocation14], 1
    %v1348 = vld [vmem:[%s1347] sm:$0x1]
    %v1349 = vsel %vm229, %v1343, 0.0
    %1350 = vadd.xlane.f32.xlu0 %v1349
    %v1351 = vpop.xlane.xlu0 %1350
    %v1352 = vsel %vm229, %v1344, 0.0
    %1353 = vadd.xlane.f32.xlu0 %v1352
    %v1354 = vpop.xlane.xlu0 %1353
    %v1355 = vmul.f32 %v1351, %v242
    %v1356 = vmul.f32 %v1354, %v242
    %v1357 = vsub.f32 %v1343, %v1355
    %v1358 = vsub.f32 %v1344, %v1356
    %v1359 = vmul.f32 %v1357, %v1357
    %v1360 = vmul.f32 %v1358, %v1358
    %v1361 = vsel %vm229, %v1359, 0.0
    %1362 = vadd.xlane.f32.xlu0 %v1361
    %v1363 = vpop.xlane.xlu0 %1362
    %v1364 = vsel %vm229, %v1360, 0.0
    %1365 = vadd.xlane.f32.xlu0 %v1364
    %v1366 = vpop.xlane.xlu0 %1365
    %v1367 = vmul.f32 %v1363, %v242
    %v1368 = vmul.f32 %v1366, %v242
    %v1369 = vadd.f32 %v1367, 1e-05
    %v1370 = vadd.f32 %v1368, 1e-05
    %v1371 = vrsqrt.pop %v1369
    %v1372 = vmul.f32 %v1371, %v1369
    %v1373 = vmul.f32 %v1372, %v1371
    %v1374 = vmul.f32 0.5, %v1373
    %v1375 = vsub.f32 1.5, %v1374
    %v1376 = vmul.f32 %v1371, %v1375
    %vm1377 = vweird.f32 %v1369
    %vm1378 = vweird.f32 %v1371
    %vm1379 = vmor %vm1377, %vm1378
    %v1380 = vsel %vm1379, %v1371, %v1376
    %v1381 = vrsqrt.pop %v1370
    %v1382 = vmul.f32 %v1381, %v1370
    %v1383 = vmul.f32 %v1382, %v1381
    %v1384 = vmul.f32 0.5, %v1383
    %v1385 = vsub.f32 1.5, %v1384
    %v1386 = vmul.f32 %v1381, %v1385
    %vm1387 = vweird.f32 %v1370
    %vm1388 = vweird.f32 %v1381
    %vm1389 = vmor %vm1387, %vm1388
    %v1390 = vsel %vm1389, %v1381, %v1386
    %v1391 = vmul.f32 %v1357, %v1380
    %v1392 = vmul.f32 %v1358, %v1390
    %v1394 = vperm.slane %v1346, 0
    %v1396 = vmul.f32 %v1391, %v1394
    %v1397 = vmul.f32 %v1392, %v1394
    %v1399 = vperm.slane %v1348, 0
    %v1401 = vadd.f32 %v1396, %v1399
    %v1402 = vadd.f32 %v1397, %v1399
    %v1403 = vpack.c.bf16 %v1402, %v1401
    %s1404 = scalar_lea.vmem %s16, 16
    %v1405 = vld [vmem:[%s1404] sm:$0xf]
    %v1406 = vld [vmem:[%s1404 + $0x4] sm:$0xf]
    %v1407 = vld [vmem:[%s1404 + $0x8] sm:$0xf]
    %v1408 = vld [vmem:[%s1404 + $0xc] sm:$0xf]
    %s1409 = scalar_lea.vmem [#allocation16], 1
    %v1410 = vld [vmem:[%s1409] sm:$0x1]
    %v1412 = vperm.slane %v1410, 0
    %v1418 = vunpack.c.l.b16 %v1405
    %v1419 = vunpack.c.l.b16 %v1406
    %v1420 = vunpack.c.l.b16 %v1407
    %v1421 = vunpack.c.l.b16 %v1408
    %v1422 = vpack.c.b16 %v1419, %v1418
    %v1423 = vpack.c.b16 %v1421, %v1420
    %v1427 = vsel %vm229, %v1403, 0
    %1429 = vmatpush.bf16.msra.mxu0 0
    %1430 = vmatpush.bf16.msra.mxu0 0
    %1431 = vmatpush.bf16.msra.mxu0 0
    %1432 = vmatpush.bf16.msra.mxu0 0
    %1433 = vmatpush.bf16.msra.mxu0 0
    %1434 = vmatpush.bf16.msra.mxu0 0
    %1435 = vmatpush.bf16.msra.mxu0 %v1423
    %1436 = vmatpush.bf16.msra.mxu0 %v1422
    %1437 = vmatmul.bf16.gmra.mxu0 %v1427
    %v1438 = vpop.f32.mrf.mxu0
    %v1439 = vadd.f32 %v1412, %v1438
    %v1440 = vpop.f32.mrf.mxu0
    %v1441 = vadd.f32 %v1412, %v1440
    %1442 = vdwg.mxu0
    %v1443 = vmul.f32 %v1439, 1.702
    %v1444 = vmul.f32 %v1441, 1.702
    %v1445 = vxor.u32 %v1443, 2147483648
    %v1446 = vxor.u32 %v1444, 2147483648
    %v1447 = vmul.f32 %v1445, 1.442695
    %v1448 = vpow.pop %v1447
    %v1449 = vmul.f32 %v1446, 1.442695
    %v1450 = vpow.pop %v1449
    %v1451 = vadd.f32 %v1448, 1.0
    %v1452 = vadd.f32 %v1450, 1.0
    %v1453 = vrcp.pop %v1451
    %v1454 = vmul.f32 %v1451, %v1453
    %v1455 = vsub.f32 1.0, %v1454
    %v1456 = vmul.f32 %v1453, %v1455
    %v1457 = vadd.f32 %v1453, %v1456
    %vm1458 = vweird.f32 %v1451
    %vm1459 = vweird.f32 %v1453
    %vm1460 = vmor %vm1458, %vm1459
    %v1461 = vsel %vm1460, %v1453, %v1457
    %v1462 = vand.u32 2147483647, %v1451
    %vm1463 = vcmp.eq.f32.partialorder %v1462, 8.507059e+37
    %v1464 = vand.u32 %v1451, 2147483648
    %v1465 = vor.u32 1.1754944e-38, %v1464
    %v1466 = vsel %vm1463, %v1465, %v1461
    %v1467 = vmul.f32 1.0, %v1466
    %v1468 = vrcp.pop %v1452
    %v1469 = vmul.f32 %v1452, %v1468
    %v1470 = vsub.f32 1.0, %v1469
    %v1471 = vmul.f32 %v1468, %v1470
    %v1472 = vadd.f32 %v1468, %v1471
    %vm1473 = vweird.f32 %v1452
    %vm1474 = vweird.f32 %v1468
    %vm1475 = vmor %vm1473, %vm1474
    %v1476 = vsel %vm1475, %v1468, %v1472
    %v1477 = vand.u32 2147483647, %v1452
    %vm1478 = vcmp.eq.f32.partialorder %v1477, 8.507059e+37
    %v1479 = vand.u32 %v1452, 2147483648
    %v1480 = vor.u32 1.1754944e-38, %v1479
    %v1481 = vsel %vm1478, %v1480, %v1476
    %v1482 = vmul.f32 1.0, %v1481
    %v1483 = vmul.f32 %v1439, %v1467
    %v1484 = vmul.f32 %v1441, %v1482
    %v1485 = vpack.c.bf16 %v1484, %v1483
    %s1486 = scalar_lea.vmem %s18, 64
    %v1487 = vld [vmem:[%s1486] sm:$0xf]
    %v1488 = vld [vmem:[%s1486 + $0x4] sm:$0xf]
    %v1489 = vld [vmem:[%s1486 + $0x8] sm:$0xf]
    %v1490 = vld [vmem:[%s1486 + $0xc] sm:$0xf]
    %v1491 = vld [vmem:[%s1486 + $0x10] sm:$0xf]
    %v1492 = vld [vmem:[%s1486 + $0x14] sm:$0xf]
    %v1493 = vld [vmem:[%s1486 + $0x18] sm:$0xf]
    %v1494 = vld [vmem:[%s1486 + $0x1c] sm:$0xf]
    %v1495 = vld [vmem:[%s1486 + $0x20] sm:$0xf]
    %v1496 = vld [vmem:[%s1486 + $0x24] sm:$0xf]
    %v1497 = vld [vmem:[%s1486 + $0x28] sm:$0xf]
    %v1498 = vld [vmem:[%s1486 + $0x2c] sm:$0xf]
    %v1499 = vld [vmem:[%s1486 + $0x30] sm:$0xf]
    %v1500 = vld [vmem:[%s1486 + $0x34] sm:$0xf]
    %v1501 = vld [vmem:[%s1486 + $0x38] sm:$0xf]
    %v1502 = vld [vmem:[%s1486 + $0x3c] sm:$0xf]
    %v1519 = vunpack.c.l.b16 %v1487
    %v1520 = vunpack.c.l.b16 %v1488
    %v1521 = vunpack.c.l.b16 %v1489
    %v1522 = vunpack.c.l.b16 %v1490
    %v1523 = vunpack.c.l.b16 %v1491
    %v1524 = vunpack.c.l.b16 %v1492
    %v1525 = vunpack.c.l.b16 %v1493
    %v1526 = vunpack.c.l.b16 %v1494
    %v1527 = vunpack.c.l.b16 %v1495
    %v1528 = vunpack.c.l.b16 %v1496
    %v1529 = vunpack.c.l.b16 %v1497
    %v1530 = vunpack.c.l.b16 %v1498
    %v1531 = vunpack.c.l.b16 %v1499
    %v1532 = vunpack.c.l.b16 %v1500
    %v1533 = vunpack.c.l.b16 %v1501
    %v1534 = vunpack.c.l.b16 %v1502
    %v1535 = vpack.c.b16 %v1520, %v1519
    %v1536 = vpack.c.b16 %v1522, %v1521
    %v1537 = vpack.c.b16 %v1524, %v1523
    %v1538 = vpack.c.b16 %v1526, %v1525
    %v1539 = vpack.c.b16 %v1528, %v1527
    %v1540 = vpack.c.b16 %v1530, %v1529
    %v1541 = vpack.c.b16 %v1532, %v1531
    %v1542 = vpack.c.b16 %v1534, %v1533
    %1551 = vmatpush.bf16.msra.mxu0 %v1542
    %1552 = vmatpush.bf16.msra.mxu0 %v1541
    %1553 = vmatpush.bf16.msra.mxu0 %v1540
    %1554 = vmatpush.bf16.msra.mxu0 %v1539
    %1555 = vmatpush.bf16.msra.mxu0 %v1538
    %1556 = vmatpush.bf16.msra.mxu0 %v1537
    %1557 = vmatpush.bf16.msra.mxu0 %v1536
    %1558 = vmatpush.bf16.msra.mxu0 %v1535
    %1559 = vmatmul.bf16.gmra.mxu0 %v1485
    %v1560 = vpop.f32.mrf.mxu0
    %v1561 = vadd.f32 0.0, %v1560
    %v1562 = vpop.f32.mrf.mxu0
    %v1563 = vadd.f32 0.0, %v1562
    %1564 = vdwg.mxu0
    %v1565 = vadd.f32 %v1343, %v1561
    %v1566 = vadd.f32 %v1344, %v1563
    %s1567 = scalar_lea.vmem [#allocation17], 1
    %v1568 = vld [vmem:[%s1567] sm:$0x1]
    %v1570 = vperm.slane %v1568, 0
    %v1572 = vadd.f32 %v1565, %v1570
    %v1573 = vadd.f32 %v1566, %v1570
    %v1574 = vld [vmem:[%s4] sm:$0x3]
    %v1576 = vsel %vm354, %v1574, 0
    %1578 = vmatpush.msra.mxu0 0.0
    %1579 = vmatpush.msra.mxu0 0.0
    %1580 = vmatpush.msra.mxu0 0.0
    %1581 = vmatpush.msra.mxu0 0.0
    %1582 = vmatpush.msra.mxu0 0.0
    %1583 = vmatpush.msra.mxu0 0.0
    %1584 = vmatpush.msra.mxu0 0.0
    %1585 = vmatpush.msra.mxu0 0.0
    %1586 = vmatpush.msra.mxu0 0.0
    %1587 = vmatpush.msra.mxu0 0.0
    %1588 = vmatpush.msra.mxu0 0.0
    %1589 = vmatpush.msra.mxu0 0.0
    %1590 = vmatpush.msra.mxu0 0.0
    %1591 = vmatpush.msra.mxu0 0.0
    %1592 = vmatpush.msra.mxu0 %v1573
    %1593 = vmatpush.msra.mxu0 %v1572
    %1594 = vmatmul.f32.gmra.mxu0 %v1576
    %v1595 = vpop.f32.mrf.mxu0
    %v1596 = vadd.f32 0.0, %v1595
    %1597 = vdwg.mxu0
    %v1598 = vld [vmem:[#allocation2] sm:$0x1]
    %v1599 = vld [vmem:[#allocation5] sm:$0x1]
    %vm1600 = vcmask 254976
    %v1601 = vsel %vm1600, %v1596, 0.0
    %1602 = vadd.xlane.f32.xlu0 %v1601
    %v1603 = vpop.xlane.xlu0 %1602
    %v1604 = vmul.f32 %v1603, %v242
    %v1605 = vsub.f32 %v1596, %v1604
    %v1606 = vmul.f32 %v1605, %v1605
    %v1607 = vsel %vm1600, %v1606, 0.0
    %1608 = vadd.xlane.f32.xlu0 %v1607
    %v1609 = vpop.xlane.xlu0 %1608
    %v1610 = vmul.f32 %v1609, %v242
    %v1611 = vadd.f32 %v1610, 1e-05
    %v1612 = vrsqrt.pop %v1611
    %v1613 = vmul.f32 %v1612, %v1611
    %v1614 = vmul.f32 %v1613, %v1612
    %v1615 = vmul.f32 0.5, %v1614
    %v1616 = vsub.f32 1.5, %v1615
    %v1617 = vmul.f32 %v1612, %v1616
    %vm1618 = vweird.f32 %v1611
    %vm1619 = vweird.f32 %v1612
    %vm1620 = vmor %vm1618, %vm1619
    %v1621 = vsel %vm1620, %v1612, %v1617
    %v1622 = vmul.f32 %v1605, %v1621
    %v1624 = vperm.slane %v1598, 0
    %v1626 = vmul.f32 %v1622, %v1624
    %v1628 = vperm.slane %v1599, 0
    %v1630 = vadd.f32 %v1626, %v1628
    %v1631 = vpack.c.bf16 %v1630, %v1630
    %v1632 = vld [vmem:[%s7] sm:$0xf]
    %v1633 = vld [vmem:[%s7 + $0x4] sm:$0xf]
    %v1634 = vld [vmem:[%s7 + $0x8] sm:$0xf]
    %v1635 = vld [vmem:[%s7 + $0xc] sm:$0xf]
    %v1640 = vunpack.c.l.b16 %v1632
    %v1641 = vunpack.c.l.b16 %v1633
    %v1642 = vunpack.c.l.b16 %v1634
    %v1643 = vunpack.c.l.b16 %v1635
    %v1644 = vpack.c.b16 %v1641, %v1640
    %v1645 = vpack.c.b16 %v1643, %v1642
    %v1649 = vsel %vm229, %v1631, 0
    %1651 = vmatpush.bf16.msra.mxu0 0
    %1652 = vmatpush.bf16.msra.mxu0 0
    %1653 = vmatpush.bf16.msra.mxu0 0
    %1654 = vmatpush.bf16.msra.mxu0 0
    %1655 = vmatpush.bf16.msra.mxu0 0
    %1656 = vmatpush.bf16.msra.mxu0 0
    %1657 = vmatpush.bf16.msra.mxu0 %v1645
    %1658 = vmatpush.bf16.msra.mxu0 %v1644
    %1659 = vmatmul.bf16.gmra.mxu0 %v1649
    %v1660 = vpop.f32.mrf.mxu0
    %v1661 = vadd.f32 0.0, %v1660
    %v1662 = vpop.f32.mrf.mxu0
    %1663 = vdwg.mxu0
    %1664 = vst.msk [vmem:[#allocation19] sm:$0x3] %vm1600, %v1661
    // Predicated region
    $region122: #{tpu_custom_call.1} parent=1 // pred_check
      _
    $region123: #{tpu_custom_call.1} parent=1 // pred_check_branch
      %1666 = sbr.rel (0) target = $region125
    $region124: #{tpu_custom_call.1} parent=1 // pred_region
      %1668 = vsyncadd [#allocation4], 0
      %s1670 = sshll.u32 [#allocation19], 4
      %s1671 = int_to_ptr.vmem [resolvable:$true] %s1670
      %s1672 = sshll.u32 %s20, 4
      %s1673 = int_to_ptr.hbm [resolvable:$true] %s1672
      %1675 = dma.vmem_to_hbm [thread:$0]  %s1671, 32, %s1673, [#allocation4]
    $region125: #{tpu_custom_call.1} parent=1 // pred_fallthru
      _
    // Predicated region
    $region126: #{tpu_custom_call.1} parent=1 // pred_check
      _
    $region127: #{tpu_custom_call.1} parent=1 // pred_check_branch
      %1677 = sbr.rel (0) target = $region129
    $region128: #{tpu_custom_call.1} parent=1 // pred_region
      %1679 = dma.done [#allocation4], 32
    $region129: #{tpu_custom_call.1} parent=1 // pred_fallthru
      _
    %1680 = vsyncpa [#allocation3], 1
    %1681 = vsyncpa [#allocation6], 1
    %1682 = vsyncpa [#allocation9], 1
    %1683 = vsyncpa [#allocation12], 1
    %1684 = vsyncpa [#allocation15], 1
    %1685 = vsyncpa [#allocation18], 1
    %1686 = vsyncpa [#allocation4], 1

</llo_original>
